<compile_context>
chip_gen: v6e
topology: v6e:2x2x1
jax: 0.10.0
libtpu: 0.0.40
codegen_flags: <defaults>
</compile_context>

<pallas_src>
import functools

import jax
import jax.numpy as jnp
from jax.experimental import pallas as pl
from jax.experimental.pallas import tpu as pltpu


IN_FEATURES = 512
N_LANES = 128  # lane-dense padding of the tiny N=2 weight for the MXU


def _round_up(x, m):
    return ((x + m - 1) // m) * m


def _tile_config():
    """Return (max_batch_tile, vmem_limit_bytes_or_None) for this TPU gen."""
    try:
        kind = jax.devices()[0].device_kind.lower()
    except Exception:  # pragma: no cover - be robust on odd backends
        kind = ""
    if "v7" in kind:
        # ~3.2 TB/s HBM, 64 MiB physical VMEM: big tiles amortize the
        # ~0.35us/step overhead.  8192-row f32 x tile = 16 MiB x 2 buffers,
        # which exceeds the 32 MiB default scoped limit -> raise it.
        return 8192, 48 << 20
    if "v6" in kind:
        # 4096-row tile (~16.5 MiB incl. double-buffering + weight) fits the
        # 32 MiB default scoped-VMEM limit.
        return 4096, None
    # v5e (16 MiB default scoped VMEM) and anything older / unknown:
    # 2048-row tile is ~8.3 MiB total -> safe everywhere.
    return 2048, None


def _pick_batch_tile(B, max_tile):
    """Batch tile: multiple of 8, capped, >=2 grid steps when B allows."""
    if B <= 8:
        return 8
    if B <= max_tile:
        if B >= 512:
            # Split into >=2 balanced tiles so dimension_semantics="parallel"
            # shards work across both TensorCores on megacore parts (v7x).
            return min(max_tile, _round_up(pl.cdiv(B, 2), 256))
        return _round_up(B, 8)
    return max_tile


def _fc_kernel(x_ref, w_ref, b_ref, o_ref):
    # (tb, 512) @ (512, 128) on the MXU, f32 accumulation, + bias row.
    acc = jnp.dot(
        x_ref[...],
        w_ref[...],
        preferred_element_type=jnp.float32,
        precision=jax.lax.Precision.HIGHEST,
    )
    out = acc + b_ref[...]                      # (tb, 128) + (1, 128)
    n = o_ref.shape[-1]
    o_ref[...] = out[:, :n].astype(o_ref.dtype)  # compact (tb, 2) store


@functools.partial(jax.jit, static_argnames=("out_features",))
def classifier_forward(x, w, b, *, out_features=2):
    """x: (B, 512); w: (out_features, 512); b: (out_features,).

    Returns (B, out_features); identical math to torch nn.Linear.
    """
    B, D = x.shape
    N = out_features

    # Lane-dense padding of the weight / bias (N=2 -> 128 lanes), done once
    # in the wrapper (tiny, not on the hot path).
    w_t = jnp.zeros((D, N_LANES), x.dtype).at[:, :N].set(w.T.astype(x.dtype))
    b_p = jnp.zeros((1, N_LANES), jnp.float32).at[:, :N].set(
        b.reshape(1, N).astype(jnp.float32)
    )

    max_tile, vmem_limit = _tile_config()
    tb = _pick_batch_tile(B, max_tile)
    grid = (pl.cdiv(B, tb),)  # ragged last block: no wrapper-side pad copy

    cp_kwargs = dict(dimension_semantics=("parallel",))
    if vmem_limit is not None:
        cp_kwargs["vmem_limit_bytes"] = vmem_limit

    out = pl.pallas_call(
        _fc_kernel,
        out_shape=jax.ShapeDtypeStruct((B, N), x.dtype),
        grid_spec=pltpu.PrefetchScalarGridSpec(
            num_scalar_prefetch=0,
            grid=grid,
            in_specs=[
                pl.BlockSpec((tb, D), lambda i: (i, 0)),        # x streams
                pl.BlockSpec((D, N_LANES), lambda i: (0, 0)),   # weight resident
                pl.BlockSpec((1, N_LANES), lambda i: (0, 0)),   # bias resident
            ],
            out_specs=pl.BlockSpec((tb, N), lambda i: (i, 0)),  # compact (B, 2)
        ),
        compiler_params=pltpu.CompilerParams(**cp_kwargs),
    )(x, w_t, b_p)

    return out


def init_params(key, in_features=IN_FEATURES, out_features=2):
    # Deterministic init mirroring nn.Linear: U(-1/sqrt(fan_in), 1/sqrt(fan_in)).
    kw, kb = jax.random.split(key)
    bound = 1.0 / jnp.sqrt(float(in_features))
    w = jax.random.uniform(
        kw, (out_features, in_features), jnp.float32, minval=-bound, maxval=bound
    )
    b = jax.random.uniform(
        kb, (out_features,), jnp.float32, minval=-bound, maxval=bound
    )
    return w, b


if __name__ == "__main__":
    key = jax.random.PRNGKey(0)
    k_x, k_p = jax.random.split(key)

    B, D, N = 8, 512, 2
    x = jax.random.normal(k_x, (B, D), jnp.float32)
    w, b = init_params(k_p, D, N)  # w: (2, 512), b: (2,)

    y = classifier_forward(x, w, b, out_features=N)
    jax.block_until_ready(y)

    # Reference at matching (HIGHEST) precision — same math as torch F.linear.
    y_ref = jnp.dot(x, w.T, precision=jax.lax.Precision.HIGHEST) + b
    assert y.shape == (B, N)
    assert jnp.allclose(y, y_ref, atol=2e-5, rtol=1e-5)

    # Multi-tile batch, not a multiple of the tile -> exercises the ragged
    # (clipped last block) path and the >=2-step megacore split.
    B2 = 2500
    x2 = jax.random.normal(jax.random.PRNGKey(1), (B2, D), jnp.float32)
    y2 = classifier_forward(x2, w, b, out_features=N)
    jax.block_until_ready(y2)
    y2_ref = jnp.dot(x2, w.T, precision=jax.lax.Precision.HIGHEST) + b
    assert y2.shape == (B2, N)
    assert jnp.allclose(y2, y2_ref, atol=1e-4, rtol=1e-5)

    print("KERNEL_OK")
</pallas_src>

<mosaic_0001>
module attributes {stable_mosaic.version = 11 : i64} {
  func.func @_fc_kernel(%arg0: i32, %arg1: memref<8x512xf32, #tpu.memory_space<vmem>>, %arg2: memref<512x128xf32, #tpu.memory_space<vmem>>, %arg3: memref<1x128xf32, #tpu.memory_space<vmem>>, %arg4: memref<8x2xf32, #tpu.memory_space<vmem>>) attributes {dimension_semantics = [#tpu.dimension_semantics<parallel>], iteration_bounds = array<i64: 1>, scalar_prefetch = 0 : i64, scratch_operands = 0 : i64, tpu.core_type = #tpu.core_type<tc>, window_params = [{transform_indices = @transform_0, window_bounds = array<i64: 8, 512>}, {pipeline_mode = #tpu.pipeline_mode<synchronous>, transform_indices = @transform_1, window_bounds = array<i64: 512, 128>}, {pipeline_mode = #tpu.pipeline_mode<synchronous>, transform_indices = @transform_2, window_bounds = array<i64: 1, 128>}, {transform_indices = @transform_3, window_bounds = array<i64: 8, 2>}]} {
    %c0 = arith.constant 0 : index
    %c0_0 = arith.constant 0 : index
    %0 = vector.load %arg1[%c0, %c0_0] : memref<8x512xf32, #tpu.memory_space<vmem>>, vector<8x512xf32>
    %c0_1 = arith.constant 0 : index
    %c0_2 = arith.constant 0 : index
    %1 = vector.load %arg2[%c0_1, %c0_2] : memref<512x128xf32, #tpu.memory_space<vmem>>, vector<512x128xf32>
    %cst = arith.constant dense<0.000000e+00> : vector<8x128xf32>
    %2 = tpu.matmul %0, %1, %cst {dimension_numbers = #tpu.dot_dimension_numbers<[1], [0], [0], [1], [0, 0, 1, 1], [], []>, precision = #tpu.contract_precision<fp32>} : vector<8x512xf32>, vector<512x128xf32>, vector<8x128xf32> -> vector<8x128xf32>
    %c0_3 = arith.constant 0 : index
    %c0_4 = arith.constant 0 : index
    %3 = vector.load %arg3[%c0_3, %c0_4] : memref<1x128xf32, #tpu.memory_space<vmem>>, vector<1x128xf32>
    %4 = vector.broadcast %3 : vector<1x128xf32> to vector<8x128xf32>
    %5 = arith.addf %2, %4 : vector<8x128xf32>
    %6 = vector.extract_strided_slice %5 {offsets = [0, 0], sizes = [8, 2], strides = [1, 1]} : vector<8x128xf32> to vector<8x2xf32>
    %c0_5 = arith.constant 0 : index
    %c0_6 = arith.constant 0 : index
    %7 = vector.load %arg4[%c0_5, %c0_6] : memref<8x2xf32, #tpu.memory_space<vmem>>, vector<8x2xf32>
    tpu.vector_store %arg4[%c0_5, %c0_6], %6 {strides = array<i32>} : memref<8x2xf32, #tpu.memory_space<vmem>>, vector<8x2xf32>,
    return
  }
  func.func @transform_0(%arg0: i32) -> (i32, i32) {
    %c0_i32 = arith.constant 0 : i32
    %c0_i32_0 = arith.constant 0 : i32
    return %arg0, %c0_i32 : i32, i32
  }
  func.func @transform_1(%arg0: i32) -> (i32, i32) {
    %c0_i32 = arith.constant 0 : i32
    %c0_i32_0 = arith.constant 0 : i32
    %c0_i32_1 = arith.constant 0 : i32
    return %c0_i32, %c0_i32_0 : i32, i32
  }
  func.func @transform_2(%arg0: i32) -> (i32, i32) {
    %c0_i32 = arith.constant 0 : i32
    %c0_i32_0 = arith.constant 0 : i32
    %c0_i32_1 = arith.constant 0 : i32
    return %c0_i32, %c0_i32_0 : i32, i32
  }
  func.func @transform_3(%arg0: i32) -> (i32, i32) {
    %c0_i32 = arith.constant 0 : i32
    %c0_i32_0 = arith.constant 0 : i32
    return %arg0, %c0_i32 : i32, i32
  }
}

</mosaic_0001>

<llo_original>
// kernel: classifier_forward.1
$region0: #{classifier_forward.1}
  #allocation0 [shape = 'u32[]', space=smem, size = 0x4, offset = 0x4, fixed_abs, tag = 'smem constant byte address 0x4 - core index']
  #allocation1 [shape = 'u32[144,128]{1,0:T(1,128)}', space=vmem, size = 0x12000, scoped, tag = 'internal scratch']
  %s0 = inlined_call_operand.vmem [shape: f32[8,512], index: 0, kind: input, shape index: {}]
  %s1 = inlined_call_operand.vmem [shape: f32[512,128], index: 1, kind: input, shape index: {}]
  %s2 = inlined_call_operand.vmem [shape: f32[1,128], index: 2, kind: input, shape index: {}]
  %s3 = inlined_call_operand.vmem [shape: f32[8,2], index: 3, kind: output, shape index: {}]
  %s4 = sld [smem:[#allocation0]]
  $region22: #{classifier_forward.1} parent=0
    _
  %s6 = ssub.s32 1, %s4
  %s7 = scalar_select 0, %s6, %s4
  // Predicated region
  $region2: #{classifier_forward.1} parent=0 // pred_check
    _
  $region3: #{classifier_forward.1} parent=0 // pred_check_branch
    %9 = sbr.rel (0) target = $region5
  $region4: #{classifier_forward.1} parent=0 // pred_region
    _
  $region5: #{classifier_forward.1} parent=0 // pred_fallthru
    _
  // Predicated region
  $region6: #{classifier_forward.1} parent=0 // pred_check
    _
  $region7: #{classifier_forward.1} parent=0 // pred_check_branch
    %11 = sbr.rel (0) target = $region9
  $region8: #{classifier_forward.1} parent=0 // pred_region
    _
  $region9: #{classifier_forward.1} parent=0 // pred_fallthru
    _
  // Predicated region
  $region10: #{classifier_forward.1} parent=0 // pred_check
    _
  $region11: #{classifier_forward.1} parent=0 // pred_check_branch
    %13 = sbr.rel (0) target = $region13
  $region12: #{classifier_forward.1} parent=0 // pred_region
    _
  $region13: #{classifier_forward.1} parent=0 // pred_fallthru
    _
  %v14 = vld [vmem:[%s0] sm:$0xff]
  %v15 = vld [vmem:[%s0 + $0x8] sm:$0xff]
  %v16 = vld [vmem:[%s0 + $0x10] sm:$0xff]
  %v17 = vld [vmem:[%s0 + $0x18] sm:$0xff]
  %v18 = vld [vmem:[%s1] sm:$0xff]
  %v19 = vld [vmem:[%s1 + $0x8] sm:$0xff]
  %v20 = vld [vmem:[%s1 + $0x10] sm:$0xff]
  %v21 = vld [vmem:[%s1 + $0x18] sm:$0xff]
  %v22 = vld [vmem:[%s1 + $0x20] sm:$0xff]
  %v23 = vld [vmem:[%s1 + $0x28] sm:$0xff]
  %v24 = vld [vmem:[%s1 + $0x30] sm:$0xff]
  %v25 = vld [vmem:[%s1 + $0x38] sm:$0xff]
  %v26 = vld [vmem:[%s1 + $0x40] sm:$0xff]
  %v27 = vld [vmem:[%s1 + $0x48] sm:$0xff]
  %v28 = vld [vmem:[%s1 + $0x50] sm:$0xff]
  %v29 = vld [vmem:[%s1 + $0x58] sm:$0xff]
  %v30 = vld [vmem:[%s1 + $0x60] sm:$0xff]
  %v31 = vld [vmem:[%s1 + $0x68] sm:$0xff]
  %v32 = vld [vmem:[%s1 + $0x70] sm:$0xff]
  %v33 = vld [vmem:[%s1 + $0x78] sm:$0xff]
  %v34 = vld [vmem:[%s1 + $0x80] sm:$0xff]
  %v35 = vld [vmem:[%s1 + $0x88] sm:$0xff]
  %v36 = vld [vmem:[%s1 + $0x90] sm:$0xff]
  %v37 = vld [vmem:[%s1 + $0x98] sm:$0xff]
  %v38 = vld [vmem:[%s1 + $0xa0] sm:$0xff]
  %v39 = vld [vmem:[%s1 + $0xa8] sm:$0xff]
  %v40 = vld [vmem:[%s1 + $0xb0] sm:$0xff]
  %v41 = vld [vmem:[%s1 + $0xb8] sm:$0xff]
  %v42 = vld [vmem:[%s1 + $0xc0] sm:$0xff]
  %v43 = vld [vmem:[%s1 + $0xc8] sm:$0xff]
  %v44 = vld [vmem:[%s1 + $0xd0] sm:$0xff]
  %v45 = vld [vmem:[%s1 + $0xd8] sm:$0xff]
  %v46 = vld [vmem:[%s1 + $0xe0] sm:$0xff]
  %v47 = vld [vmem:[%s1 + $0xe8] sm:$0xff]
  %v48 = vld [vmem:[%s1 + $0xf0] sm:$0xff]
  %v49 = vld [vmem:[%s1 + $0xf8] sm:$0xff]
  %v50 = vld [vmem:[%s1 + $0x100] sm:$0xff]
  %v51 = vld [vmem:[%s1 + $0x108] sm:$0xff]
  %v52 = vld [vmem:[%s1 + $0x110] sm:$0xff]
  %v53 = vld [vmem:[%s1 + $0x118] sm:$0xff]
  %v54 = vld [vmem:[%s1 + $0x120] sm:$0xff]
  %v55 = vld [vmem:[%s1 + $0x128] sm:$0xff]
  %v56 = vld [vmem:[%s1 + $0x130] sm:$0xff]
  %v57 = vld [vmem:[%s1 + $0x138] sm:$0xff]
  %v58 = vld [vmem:[%s1 + $0x140] sm:$0xff]
  %v59 = vld [vmem:[%s1 + $0x148] sm:$0xff]
  %v60 = vld [vmem:[%s1 + $0x150] sm:$0xff]
  %v61 = vld [vmem:[%s1 + $0x158] sm:$0xff]
  %v62 = vld [vmem:[%s1 + $0x160] sm:$0xff]
  %v63 = vld [vmem:[%s1 + $0x168] sm:$0xff]
  %v64 = vld [vmem:[%s1 + $0x170] sm:$0xff]
  %v65 = vld [vmem:[%s1 + $0x178] sm:$0xff]
  %v66 = vld [vmem:[%s1 + $0x180] sm:$0xff]
  %v67 = vld [vmem:[%s1 + $0x188] sm:$0xff]
  %v68 = vld [vmem:[%s1 + $0x190] sm:$0xff]
  %v69 = vld [vmem:[%s1 + $0x198] sm:$0xff]
  %v70 = vld [vmem:[%s1 + $0x1a0] sm:$0xff]
  %v71 = vld [vmem:[%s1 + $0x1a8] sm:$0xff]
  %v72 = vld [vmem:[%s1 + $0x1b0] sm:$0xff]
  %v73 = vld [vmem:[%s1 + $0x1b8] sm:$0xff]
  %v74 = vld [vmem:[%s1 + $0x1c0] sm:$0xff]
  %v75 = vld [vmem:[%s1 + $0x1c8] sm:$0xff]
  %v76 = vld [vmem:[%s1 + $0x1d0] sm:$0xff]
  %v77 = vld [vmem:[%s1 + $0x1d8] sm:$0xff]
  %v78 = vld [vmem:[%s1 + $0x1e0] sm:$0xff]
  %v79 = vld [vmem:[%s1 + $0x1e8] sm:$0xff]
  %v80 = vld [vmem:[%s1 + $0x1f0] sm:$0xff]
  %v81 = vld [vmem:[%s1 + $0x1f8] sm:$0xff]
  %v82 = vld [vmem:[%s2] sm:$0x1]
  %v84 = vlaneseq
  %v85 = vshrl.u32 %v84, 7
  %v86 = vsub.s32 0, %v85
  %v87 = vrot.slane %v82, %v86
  %89 = vmatprep.subr.mxu0 0.0
  %v90 = vand.u32 %v33, 4294901760
  %91 = vmatpush1.msra.mxu0 %v90
  %92 = vmatprep.subr.mxu0 0.0
  %v93 = vand.u32 %v32, 4294901760
  %94 = vmatpush1.msra.mxu0 %v93
  %95 = vmatprep.subr.mxu0 0.0
  %v96 = vand.u32 %v31, 4294901760
  %97 = vmatpush1.msra.mxu0 %v96
  %98 = vmatprep.subr.mxu0 0.0
  %v99 = vand.u32 %v30, 4294901760
  %100 = vmatpush1.msra.mxu0 %v99
  %101 = vmatprep.subr.mxu0 0.0
  %v102 = vand.u32 %v29, 4294901760
  %103 = vmatpush1.msra.mxu0 %v102
  %104 = vmatprep.subr.mxu0 0.0
  %v105 = vand.u32 %v28, 4294901760
  %106 = vmatpush1.msra.mxu0 %v105
  %107 = vmatprep.subr.mxu0 0.0
  %v108 = vand.u32 %v27, 4294901760
  %109 = vmatpush1.msra.mxu0 %v108
  %110 = vmatprep.subr.mxu0 0.0
  %v111 = vand.u32 %v26, 4294901760
  %112 = vmatpush1.msra.mxu0 %v111
  %113 = vmatprep.subr.mxu0 0.0
  %v114 = vand.u32 %v25, 4294901760
  %115 = vmatpush1.msra.mxu0 %v114
  %116 = vmatprep.subr.mxu0 0.0
  %v117 = vand.u32 %v24, 4294901760
  %118 = vmatpush1.msra.mxu0 %v117
  %119 = vmatprep.subr.mxu0 0.0
  %v120 = vand.u32 %v23, 4294901760
  %121 = vmatpush1.msra.mxu0 %v120
  %122 = vmatprep.subr.mxu0 0.0
  %v123 = vand.u32 %v22, 4294901760
  %124 = vmatpush1.msra.mxu0 %v123
  %125 = vmatprep.subr.mxu0 0.0
  %v126 = vand.u32 %v21, 4294901760
  %127 = vmatpush1.msra.mxu0 %v126
  %128 = vmatprep.subr.mxu0 0.0
  %v129 = vand.u32 %v20, 4294901760
  %130 = vmatpush1.msra.mxu0 %v129
  %131 = vmatprep.subr.mxu0 0.0
  %v132 = vand.u32 %v19, 4294901760
  %133 = vmatpush1.msra.mxu0 %v132
  %134 = vmatprep.subr.mxu0 0.0
  %v135 = vand.u32 %v18, 4294901760
  %136 = vmatpush1.msra.mxu0 %v135
  %137 = vmatprep.subr.mxu0 0.0
  %v138 = vand.u32 %v49, 4294901760
  %139 = vmatpush2.msra.mxu0 %v138
  %140 = vmatprep.subr.mxu0 0.0
  %v141 = vand.u32 %v48, 4294901760
  %142 = vmatpush2.msra.mxu0 %v141
  %143 = vmatprep.subr.mxu0 0.0
  %v144 = vand.u32 %v47, 4294901760
  %145 = vmatpush2.msra.mxu0 %v144
  %146 = vmatprep.subr.mxu0 0.0
  %v147 = vand.u32 %v46, 4294901760
  %148 = vmatpush2.msra.mxu0 %v147
  %149 = vmatprep.subr.mxu0 0.0
  %v150 = vand.u32 %v45, 4294901760
  %151 = vmatpush2.msra.mxu0 %v150
  %152 = vmatprep.subr.mxu0 0.0
  %v153 = vand.u32 %v44, 4294901760
  %154 = vmatpush2.msra.mxu0 %v153
  %155 = vmatprep.subr.mxu0 0.0
  %v156 = vand.u32 %v43, 4294901760
  %157 = vmatpush2.msra.mxu0 %v156
  %158 = vmatprep.subr.mxu0 0.0
  %v159 = vand.u32 %v42, 4294901760
  %160 = vmatpush2.msra.mxu0 %v159
  %161 = vmatprep.subr.mxu0 0.0
  %v162 = vand.u32 %v41, 4294901760
  %163 = vmatpush2.msra.mxu0 %v162
  %164 = vmatprep.subr.mxu0 0.0
  %v165 = vand.u32 %v40, 4294901760
  %166 = vmatpush2.msra.mxu0 %v165
  %167 = vmatprep.subr.mxu0 0.0
  %v168 = vand.u32 %v39, 4294901760
  %169 = vmatpush2.msra.mxu0 %v168
  %170 = vmatprep.subr.mxu0 0.0
  %v171 = vand.u32 %v38, 4294901760
  %172 = vmatpush2.msra.mxu0 %v171
  %173 = vmatprep.subr.mxu0 0.0
  %v174 = vand.u32 %v37, 4294901760
  %175 = vmatpush2.msra.mxu0 %v174
  %176 = vmatprep.subr.mxu0 0.0
  %v177 = vand.u32 %v36, 4294901760
  %178 = vmatpush2.msra.mxu0 %v177
  %179 = vmatprep.subr.mxu0 0.0
  %v180 = vand.u32 %v35, 4294901760
  %181 = vmatpush2.msra.mxu0 %v180
  %182 = vmatprep.subr.mxu0 0.0
  %v183 = vand.u32 %v34, 4294901760
  %184 = vmatpush2.msra.mxu0 %v183
  %v185 = vand.u32 %v15, 4294901760
  %v186 = vsub.f32 %v15, %v185
  %v187 = vand.u32 %v186, 4294901760
  %v188 = vsub.f32 %v186, %v187
  %v189 = vand.u32 %v188, 4294901760
  %190 = vmatprep.mubr.f32.mxu0 %v189
  %v191 = vand.u32 %v14, 4294901760
  %v192 = vsub.f32 %v14, %v191
  %v193 = vand.u32 %v192, 4294901760
  %v194 = vsub.f32 %v192, %v193
  %v195 = vand.u32 %v194, 4294901760
  %196 = vmatmul.mubr.f32.gmra.mxu0 %v195
  %v197 = vpop.f32.mrf.mxu0
  %v198 = vadd.f32 %v87, %v197
  %v199 = vpop.f32.mrf.mxu0
  %200 = vdwg.mxu0
  %201 = vmatprep.subr.mxu0 0.0
  %v202 = vand.u32 %v33, 4294901760
  %v203 = vsub.f32 %v33, %v202
  %v204 = vand.u32 %v203, 4294901760
  %v205 = vsub.f32 %v203, %v204
  %v206 = vand.u32 %v205, 4294901760
  %207 = vmatpush1.msra.mxu0 %v206
  %208 = vmatprep.subr.mxu0 0.0
  %v209 = vand.u32 %v32, 4294901760
  %v210 = vsub.f32 %v32, %v209
  %v211 = vand.u32 %v210, 4294901760
  %v212 = vsub.f32 %v210, %v211
  %v213 = vand.u32 %v212, 4294901760
  %214 = vmatpush1.msra.mxu0 %v213
  %215 = vmatprep.subr.mxu0 0.0
  %v216 = vand.u32 %v31, 4294901760
  %v217 = vsub.f32 %v31, %v216
  %v218 = vand.u32 %v217, 4294901760
  %v219 = vsub.f32 %v217, %v218
  %v220 = vand.u32 %v219, 4294901760
  %221 = vmatpush1.msra.mxu0 %v220
  %222 = vmatprep.subr.mxu0 0.0
  %v223 = vand.u32 %v30, 4294901760
  %v224 = vsub.f32 %v30, %v223
  %v225 = vand.u32 %v224, 4294901760
  %v226 = vsub.f32 %v224, %v225
  %v227 = vand.u32 %v226, 4294901760
  %228 = vmatpush1.msra.mxu0 %v227
  %229 = vmatprep.subr.mxu0 0.0
  %v230 = vand.u32 %v29, 4294901760
  %v231 = vsub.f32 %v29, %v230
  %v232 = vand.u32 %v231, 4294901760
  %v233 = vsub.f32 %v231, %v232
  %v234 = vand.u32 %v233, 4294901760
  %235 = vmatpush1.msra.mxu0 %v234
  %236 = vmatprep.subr.mxu0 0.0
  %v237 = vand.u32 %v28, 4294901760
  %v238 = vsub.f32 %v28, %v237
  %v239 = vand.u32 %v238, 4294901760
  %v240 = vsub.f32 %v238, %v239
  %v241 = vand.u32 %v240, 4294901760
  %242 = vmatpush1.msra.mxu0 %v241
  %243 = vmatprep.subr.mxu0 0.0
  %v244 = vand.u32 %v27, 4294901760
  %v245 = vsub.f32 %v27, %v244
  %v246 = vand.u32 %v245, 4294901760
  %v247 = vsub.f32 %v245, %v246
  %v248 = vand.u32 %v247, 4294901760
  %249 = vmatpush1.msra.mxu0 %v248
  %250 = vmatprep.subr.mxu0 0.0
  %v251 = vand.u32 %v26, 4294901760
  %v252 = vsub.f32 %v26, %v251
  %v253 = vand.u32 %v252, 4294901760
  %v254 = vsub.f32 %v252, %v253
  %v255 = vand.u32 %v254, 4294901760
  %256 = vmatpush1.msra.mxu0 %v255
  %257 = vmatprep.subr.mxu0 0.0
  %v258 = vand.u32 %v25, 4294901760
  %v259 = vsub.f32 %v25, %v258
  %v260 = vand.u32 %v259, 4294901760
  %v261 = vsub.f32 %v259, %v260
  %v262 = vand.u32 %v261, 4294901760
  %263 = vmatpush1.msra.mxu0 %v262
  %264 = vmatprep.subr.mxu0 0.0
  %v265 = vand.u32 %v24, 4294901760
  %v266 = vsub.f32 %v24, %v265
  %v267 = vand.u32 %v266, 4294901760
  %v268 = vsub.f32 %v266, %v267
  %v269 = vand.u32 %v268, 4294901760
  %270 = vmatpush1.msra.mxu0 %v269
  %271 = vmatprep.subr.mxu0 0.0
  %v272 = vand.u32 %v23, 4294901760
  %v273 = vsub.f32 %v23, %v272
  %v274 = vand.u32 %v273, 4294901760
  %v275 = vsub.f32 %v273, %v274
  %v276 = vand.u32 %v275, 4294901760
  %277 = vmatpush1.msra.mxu0 %v276
  %278 = vmatprep.subr.mxu0 0.0
  %v279 = vand.u32 %v22, 4294901760
  %v280 = vsub.f32 %v22, %v279
  %v281 = vand.u32 %v280, 4294901760
  %v282 = vsub.f32 %v280, %v281
  %v283 = vand.u32 %v282, 4294901760
  %284 = vmatpush1.msra.mxu0 %v283
  %285 = vmatprep.subr.mxu0 0.0
  %v286 = vand.u32 %v21, 4294901760
  %v287 = vsub.f32 %v21, %v286
  %v288 = vand.u32 %v287, 4294901760
  %v289 = vsub.f32 %v287, %v288
  %v290 = vand.u32 %v289, 4294901760
  %291 = vmatpush1.msra.mxu0 %v290
  %292 = vmatprep.subr.mxu0 0.0
  %v293 = vand.u32 %v20, 4294901760
  %v294 = vsub.f32 %v20, %v293
  %v295 = vand.u32 %v294, 4294901760
  %v296 = vsub.f32 %v294, %v295
  %v297 = vand.u32 %v296, 4294901760
  %298 = vmatpush1.msra.mxu0 %v297
  %299 = vmatprep.subr.mxu0 0.0
  %v300 = vand.u32 %v19, 4294901760
  %v301 = vsub.f32 %v19, %v300
  %v302 = vand.u32 %v301, 4294901760
  %v303 = vsub.f32 %v301, %v302
  %v304 = vand.u32 %v303, 4294901760
  %305 = vmatpush1.msra.mxu0 %v304
  %306 = vmatprep.subr.mxu0 0.0
  %v307 = vand.u32 %v18, 4294901760
  %v308 = vsub.f32 %v18, %v307
  %v309 = vand.u32 %v308, 4294901760
  %v310 = vsub.f32 %v308, %v309
  %v311 = vand.u32 %v310, 4294901760
  %312 = vmatpush1.msra.mxu0 %v311
  %313 = vmatprep.subr.mxu0 0.0
  %v314 = vand.u32 %v49, 4294901760
  %v315 = vsub.f32 %v49, %v314
  %v316 = vand.u32 %v315, 4294901760
  %v317 = vsub.f32 %v315, %v316
  %v318 = vand.u32 %v317, 4294901760
  %319 = vmatpush2.msra.mxu0 %v318
  %320 = vmatprep.subr.mxu0 0.0
  %v321 = vand.u32 %v48, 4294901760
  %v322 = vsub.f32 %v48, %v321
  %v323 = vand.u32 %v322, 4294901760
  %v324 = vsub.f32 %v322, %v323
  %v325 = vand.u32 %v324, 4294901760
  %326 = vmatpush2.msra.mxu0 %v325
  %327 = vmatprep.subr.mxu0 0.0
  %v328 = vand.u32 %v47, 4294901760
  %v329 = vsub.f32 %v47, %v328
  %v330 = vand.u32 %v329, 4294901760
  %v331 = vsub.f32 %v329, %v330
  %v332 = vand.u32 %v331, 4294901760
  %333 = vmatpush2.msra.mxu0 %v332
  %334 = vmatprep.subr.mxu0 0.0
  %v335 = vand.u32 %v46, 4294901760
  %v336 = vsub.f32 %v46, %v335
  %v337 = vand.u32 %v336, 4294901760
  %v338 = vsub.f32 %v336, %v337
  %v339 = vand.u32 %v338, 4294901760
  %340 = vmatpush2.msra.mxu0 %v339
  %341 = vmatprep.subr.mxu0 0.0
  %v342 = vand.u32 %v45, 4294901760
  %v343 = vsub.f32 %v45, %v342
  %v344 = vand.u32 %v343, 4294901760
  %v345 = vsub.f32 %v343, %v344
  %v346 = vand.u32 %v345, 4294901760
  %347 = vmatpush2.msra.mxu0 %v346
  %348 = vmatprep.subr.mxu0 0.0
  %v349 = vand.u32 %v44, 4294901760
  %v350 = vsub.f32 %v44, %v349
  %v351 = vand.u32 %v350, 4294901760
  %v352 = vsub.f32 %v350, %v351
  %v353 = vand.u32 %v352, 4294901760
  %354 = vmatpush2.msra.mxu0 %v353
  %355 = vmatprep.subr.mxu0 0.0
  %v356 = vand.u32 %v43, 4294901760
  %v357 = vsub.f32 %v43, %v356
  %v358 = vand.u32 %v357, 4294901760
  %v359 = vsub.f32 %v357, %v358
  %v360 = vand.u32 %v359, 4294901760
  %361 = vmatpush2.msra.mxu0 %v360
  %362 = vmatprep.subr.mxu0 0.0
  %v363 = vand.u32 %v42, 4294901760
  %v364 = vsub.f32 %v42, %v363
  %v365 = vand.u32 %v364, 4294901760
  %v366 = vsub.f32 %v364, %v365
  %v367 = vand.u32 %v366, 4294901760
  %368 = vmatpush2.msra.mxu0 %v367
  %369 = vmatprep.subr.mxu0 0.0
  %v370 = vand.u32 %v41, 4294901760
  %v371 = vsub.f32 %v41, %v370
  %v372 = vand.u32 %v371, 4294901760
  %v373 = vsub.f32 %v371, %v372
  %v374 = vand.u32 %v373, 4294901760
  %375 = vmatpush2.msra.mxu0 %v374
  %376 = vmatprep.subr.mxu0 0.0
  %v377 = vand.u32 %v40, 4294901760
  %v378 = vsub.f32 %v40, %v377
  %v379 = vand.u32 %v378, 4294901760
  %v380 = vsub.f32 %v378, %v379
  %v381 = vand.u32 %v380, 4294901760
  %382 = vmatpush2.msra.mxu0 %v381
  %383 = vmatprep.subr.mxu0 0.0
  %v384 = vand.u32 %v39, 4294901760
  %v385 = vsub.f32 %v39, %v384
  %v386 = vand.u32 %v385, 4294901760
  %v387 = vsub.f32 %v385, %v386
  %v388 = vand.u32 %v387, 4294901760
  %389 = vmatpush2.msra.mxu0 %v388
  %390 = vmatprep.subr.mxu0 0.0
  %v391 = vand.u32 %v38, 4294901760
  %v392 = vsub.f32 %v38, %v391
  %v393 = vand.u32 %v392, 4294901760
  %v394 = vsub.f32 %v392, %v393
  %v395 = vand.u32 %v394, 4294901760
  %396 = vmatpush2.msra.mxu0 %v395
  %397 = vmatprep.subr.mxu0 0.0
  %v398 = vand.u32 %v37, 4294901760
  %v399 = vsub.f32 %v37, %v398
  %v400 = vand.u32 %v399, 4294901760
  %v401 = vsub.f32 %v399, %v400
  %v402 = vand.u32 %v401, 4294901760
  %403 = vmatpush2.msra.mxu0 %v402
  %404 = vmatprep.subr.mxu0 0.0
  %v405 = vand.u32 %v36, 4294901760
  %v406 = vsub.f32 %v36, %v405
  %v407 = vand.u32 %v406, 4294901760
  %v408 = vsub.f32 %v406, %v407
  %v409 = vand.u32 %v408, 4294901760
  %410 = vmatpush2.msra.mxu0 %v409
  %411 = vmatprep.subr.mxu0 0.0
  %v412 = vand.u32 %v35, 4294901760
  %v413 = vsub.f32 %v35, %v412
  %v414 = vand.u32 %v413, 4294901760
  %v415 = vsub.f32 %v413, %v414
  %v416 = vand.u32 %v415, 4294901760
  %417 = vmatpush2.msra.mxu0 %v416
  %418 = vmatprep.subr.mxu0 0.0
  %v419 = vand.u32 %v34, 4294901760
  %v420 = vsub.f32 %v34, %v419
  %v421 = vand.u32 %v420, 4294901760
  %v422 = vsub.f32 %v420, %v421
  %v423 = vand.u32 %v422, 4294901760
  %424 = vmatpush2.msra.mxu0 %v423
  %v425 = vand.u32 %v15, 4294901760
  %426 = vmatprep.mubr.f32.mxu0 %v425
  %v427 = vand.u32 %v14, 4294901760
  %428 = vmatmul.mubr.f32.gmra.mxu0 %v427
  %v429 = vpop.f32.mrf.mxu0
  %v430 = vadd.f32 %v198, %v429
  %v431 = vpop.f32.mrf.mxu0
  %432 = vdwg.mxu0
  %433 = vmatprep.subr.mxu0 0.0
  %v434 = vand.u32 %v33, 4294901760
  %v435 = vsub.f32 %v33, %v434
  %436 = vmatpush1.msra.mxu0 %v435
  %437 = vmatprep.subr.mxu0 0.0
  %v438 = vand.u32 %v32, 4294901760
  %v439 = vsub.f32 %v32, %v438
  %440 = vmatpush1.msra.mxu0 %v439
  %441 = vmatprep.subr.mxu0 0.0
  %v442 = vand.u32 %v31, 4294901760
  %v443 = vsub.f32 %v31, %v442
  %444 = vmatpush1.msra.mxu0 %v443
  %445 = vmatprep.subr.mxu0 0.0
  %v446 = vand.u32 %v30, 4294901760
  %v447 = vsub.f32 %v30, %v446
  %448 = vmatpush1.msra.mxu0 %v447
  %449 = vmatprep.subr.mxu0 0.0
  %v450 = vand.u32 %v29, 4294901760
  %v451 = vsub.f32 %v29, %v450
  %452 = vmatpush1.msra.mxu0 %v451
  %453 = vmatprep.subr.mxu0 0.0
  %v454 = vand.u32 %v28, 4294901760
  %v455 = vsub.f32 %v28, %v454
  %456 = vmatpush1.msra.mxu0 %v455
  %457 = vmatprep.subr.mxu0 0.0
  %v458 = vand.u32 %v27, 4294901760
  %v459 = vsub.f32 %v27, %v458
  %460 = vmatpush1.msra.mxu0 %v459
  %461 = vmatprep.subr.mxu0 0.0
  %v462 = vand.u32 %v26, 4294901760
  %v463 = vsub.f32 %v26, %v462
  %464 = vmatpush1.msra.mxu0 %v463
  %465 = vmatprep.subr.mxu0 0.0
  %v466 = vand.u32 %v25, 4294901760
  %v467 = vsub.f32 %v25, %v466
  %468 = vmatpush1.msra.mxu0 %v467
  %469 = vmatprep.subr.mxu0 0.0
  %v470 = vand.u32 %v24, 4294901760
  %v471 = vsub.f32 %v24, %v470
  %472 = vmatpush1.msra.mxu0 %v471
  %473 = vmatprep.subr.mxu0 0.0
  %v474 = vand.u32 %v23, 4294901760
  %v475 = vsub.f32 %v23, %v474
  %476 = vmatpush1.msra.mxu0 %v475
  %477 = vmatprep.subr.mxu0 0.0
  %v478 = vand.u32 %v22, 4294901760
  %v479 = vsub.f32 %v22, %v478
  %480 = vmatpush1.msra.mxu0 %v479
  %481 = vmatprep.subr.mxu0 0.0
  %v482 = vand.u32 %v21, 4294901760
  %v483 = vsub.f32 %v21, %v482
  %484 = vmatpush1.msra.mxu0 %v483
  %485 = vmatprep.subr.mxu0 0.0
  %v486 = vand.u32 %v20, 4294901760
  %v487 = vsub.f32 %v20, %v486
  %488 = vmatpush1.msra.mxu0 %v487
  %489 = vmatprep.subr.mxu0 0.0
  %v490 = vand.u32 %v19, 4294901760
  %v491 = vsub.f32 %v19, %v490
  %492 = vmatpush1.msra.mxu0 %v491
  %493 = vmatprep.subr.mxu0 0.0
  %v494 = vand.u32 %v18, 4294901760
  %v495 = vsub.f32 %v18, %v494
  %496 = vmatpush1.msra.mxu0 %v495
  %497 = vmatprep.subr.mxu0 0.0
  %v498 = vand.u32 %v49, 4294901760
  %v499 = vsub.f32 %v49, %v498
  %500 = vmatpush2.msra.mxu0 %v499
  %501 = vmatprep.subr.mxu0 0.0
  %v502 = vand.u32 %v48, 4294901760
  %v503 = vsub.f32 %v48, %v502
  %504 = vmatpush2.msra.mxu0 %v503
  %505 = vmatprep.subr.mxu0 0.0
  %v506 = vand.u32 %v47, 4294901760
  %v507 = vsub.f32 %v47, %v506
  %508 = vmatpush2.msra.mxu0 %v507
  %509 = vmatprep.subr.mxu0 0.0
  %v510 = vand.u32 %v46, 4294901760
  %v511 = vsub.f32 %v46, %v510
  %512 = vmatpush2.msra.mxu0 %v511
  %513 = vmatprep.subr.mxu0 0.0
  %v514 = vand.u32 %v45, 4294901760
  %v515 = vsub.f32 %v45, %v514
  %516 = vmatpush2.msra.mxu0 %v515
  %517 = vmatprep.subr.mxu0 0.0
  %v518 = vand.u32 %v44, 4294901760
  %v519 = vsub.f32 %v44, %v518
  %520 = vmatpush2.msra.mxu0 %v519
  %521 = vmatprep.subr.mxu0 0.0
  %v522 = vand.u32 %v43, 4294901760
  %v523 = vsub.f32 %v43, %v522
  %524 = vmatpush2.msra.mxu0 %v523
  %525 = vmatprep.subr.mxu0 0.0
  %v526 = vand.u32 %v42, 4294901760
  %v527 = vsub.f32 %v42, %v526
  %528 = vmatpush2.msra.mxu0 %v527
  %529 = vmatprep.subr.mxu0 0.0
  %v530 = vand.u32 %v41, 4294901760
  %v531 = vsub.f32 %v41, %v530
  %532 = vmatpush2.msra.mxu0 %v531
  %533 = vmatprep.subr.mxu0 0.0
  %v534 = vand.u32 %v40, 4294901760
  %v535 = vsub.f32 %v40, %v534
  %536 = vmatpush2.msra.mxu0 %v535
  %537 = vmatprep.subr.mxu0 0.0
  %v538 = vand.u32 %v39, 4294901760
  %v539 = vsub.f32 %v39, %v538
  %540 = vmatpush2.msra.mxu0 %v539
  %541 = vmatprep.subr.mxu0 0.0
  %v542 = vand.u32 %v38, 4294901760
  %v543 = vsub.f32 %v38, %v542
  %544 = vmatpush2.msra.mxu0 %v543
  %545 = vmatprep.subr.mxu0 0.0
  %v546 = vand.u32 %v37, 4294901760
  %v547 = vsub.f32 %v37, %v546
  %548 = vmatpush2.msra.mxu0 %v547
  %549 = vmatprep.subr.mxu0 0.0
  %v550 = vand.u32 %v36, 4294901760
  %v551 = vsub.f32 %v36, %v550
  %552 = vmatpush2.msra.mxu0 %v551
  %553 = vmatprep.subr.mxu0 0.0
  %v554 = vand.u32 %v35, 4294901760
  %v555 = vsub.f32 %v35, %v554
  %556 = vmatpush2.msra.mxu0 %v555
  %557 = vmatprep.subr.mxu0 0.0
  %v558 = vand.u32 %v34, 4294901760
  %v559 = vsub.f32 %v34, %v558
  %560 = vmatpush2.msra.mxu0 %v559
  %v561 = vand.u32 %v15, 4294901760
  %v562 = vsub.f32 %v15, %v561
  %563 = vmatprep.mubr.f32.mxu0 %v562
  %v564 = vand.u32 %v14, 4294901760
  %v565 = vsub.f32 %v14, %v564
  %566 = vmatmul.mubr.f32.gmra.mxu0 %v565
  %v567 = vpop.f32.mrf.mxu0
  %v568 = vadd.f32 %v430, %v567
  %v569 = vpop.f32.mrf.mxu0
  %570 = vdwg.mxu0
  %571 = vmatprep.subr.mxu0 0.0
  %v572 = vand.u32 %v33, 4294901760
  %573 = vmatpush1.msra.mxu0 %v572
  %574 = vmatprep.subr.mxu0 0.0
  %v575 = vand.u32 %v32, 4294901760
  %576 = vmatpush1.msra.mxu0 %v575
  %577 = vmatprep.subr.mxu0 0.0
  %v578 = vand.u32 %v31, 4294901760
  %579 = vmatpush1.msra.mxu0 %v578
  %580 = vmatprep.subr.mxu0 0.0
  %v581 = vand.u32 %v30, 4294901760
  %582 = vmatpush1.msra.mxu0 %v581
  %583 = vmatprep.subr.mxu0 0.0
  %v584 = vand.u32 %v29, 4294901760
  %585 = vmatpush1.msra.mxu0 %v584
  %586 = vmatprep.subr.mxu0 0.0
  %v587 = vand.u32 %v28, 4294901760
  %588 = vmatpush1.msra.mxu0 %v587
  %589 = vmatprep.subr.mxu0 0.0
  %v590 = vand.u32 %v27, 4294901760
  %591 = vmatpush1.msra.mxu0 %v590
  %592 = vmatprep.subr.mxu0 0.0
  %v593 = vand.u32 %v26, 4294901760
  %594 = vmatpush1.msra.mxu0 %v593
  %595 = vmatprep.subr.mxu0 0.0
  %v596 = vand.u32 %v25, 4294901760
  %597 = vmatpush1.msra.mxu0 %v596
  %598 = vmatprep.subr.mxu0 0.0
  %v599 = vand.u32 %v24, 4294901760
  %600 = vmatpush1.msra.mxu0 %v599
  %601 = vmatprep.subr.mxu0 0.0
  %v602 = vand.u32 %v23, 4294901760
  %603 = vmatpush1.msra.mxu0 %v602
  %604 = vmatprep.subr.mxu0 0.0
  %v605 = vand.u32 %v22, 4294901760
  %606 = vmatpush1.msra.mxu0 %v605
  %607 = vmatprep.subr.mxu0 0.0
  %v608 = vand.u32 %v21, 4294901760
  %609 = vmatpush1.msra.mxu0 %v608
  %610 = vmatprep.subr.mxu0 0.0
  %v611 = vand.u32 %v20, 4294901760
  %612 = vmatpush1.msra.mxu0 %v611
  %613 = vmatprep.subr.mxu0 0.0
  %v614 = vand.u32 %v19, 4294901760
  %615 = vmatpush1.msra.mxu0 %v614
  %616 = vmatprep.subr.mxu0 0.0
  %v617 = vand.u32 %v18, 4294901760
  %618 = vmatpush1.msra.mxu0 %v617
  %619 = vmatprep.subr.mxu0 0.0
  %v620 = vand.u32 %v49, 4294901760
  %621 = vmatpush2.msra.mxu0 %v620
  %622 = vmatprep.subr.mxu0 0.0
  %v623 = vand.u32 %v48, 4294901760
  %624 = vmatpush2.msra.mxu0 %v623
  %625 = vmatprep.subr.mxu0 0.0
  %v626 = vand.u32 %v47, 4294901760
  %627 = vmatpush2.msra.mxu0 %v626
  %628 = vmatprep.subr.mxu0 0.0
  %v629 = vand.u32 %v46, 4294901760
  %630 = vmatpush2.msra.mxu0 %v629
  %631 = vmatprep.subr.mxu0 0.0
  %v632 = vand.u32 %v45, 4294901760
  %633 = vmatpush2.msra.mxu0 %v632
  %634 = vmatprep.subr.mxu0 0.0
  %v635 = vand.u32 %v44, 4294901760
  %636 = vmatpush2.msra.mxu0 %v635
  %637 = vmatprep.subr.mxu0 0.0
  %v638 = vand.u32 %v43, 4294901760
  %639 = vmatpush2.msra.mxu0 %v638
  %640 = vmatprep.subr.mxu0 0.0
  %v641 = vand.u32 %v42, 4294901760
  %642 = vmatpush2.msra.mxu0 %v641
  %643 = vmatprep.subr.mxu0 0.0
  %v644 = vand.u32 %v41, 4294901760
  %645 = vmatpush2.msra.mxu0 %v644
  %646 = vmatprep.subr.mxu0 0.0
  %v647 = vand.u32 %v40, 4294901760
  %648 = vmatpush2.msra.mxu0 %v647
  %649 = vmatprep.subr.mxu0 0.0
  %v650 = vand.u32 %v39, 4294901760
  %651 = vmatpush2.msra.mxu0 %v650
  %652 = vmatprep.subr.mxu0 0.0
  %v653 = vand.u32 %v38, 4294901760
  %654 = vmatpush2.msra.mxu0 %v653
  %655 = vmatprep.subr.mxu0 0.0
  %v656 = vand.u32 %v37, 4294901760
  %657 = vmatpush2.msra.mxu0 %v656
  %658 = vmatprep.subr.mxu0 0.0
  %v659 = vand.u32 %v36, 4294901760
  %660 = vmatpush2.msra.mxu0 %v659
  %661 = vmatprep.subr.mxu0 0.0
  %v662 = vand.u32 %v35, 4294901760
  %663 = vmatpush2.msra.mxu0 %v662
  %664 = vmatprep.subr.mxu0 0.0
  %v665 = vand.u32 %v34, 4294901760
  %666 = vmatpush2.msra.mxu0 %v665
  %v667 = vand.u32 %v15, 4294901760
  %v668 = vsub.f32 %v15, %v667
  %v669 = vand.u32 %v668, 4294901760
  %670 = vmatprep.mubr.f32.mxu0 %v669
  %v671 = vand.u32 %v14, 4294901760
  %v672 = vsub.f32 %v14, %v671
  %v673 = vand.u32 %v672, 4294901760
  %674 = vmatmul.mubr.f32.gmra.mxu0 %v673
  %v675 = vpop.f32.mrf.mxu0
  %v676 = vadd.f32 %v568, %v675
  %v677 = vpop.f32.mrf.mxu0
  %678 = vdwg.mxu0
  %679 = vmatprep.subr.mxu0 0.0
  %v680 = vand.u32 %v33, 4294901760
  %v681 = vsub.f32 %v33, %v680
  %v682 = vand.u32 %v681, 4294901760
  %683 = vmatpush1.msra.mxu0 %v682
  %684 = vmatprep.subr.mxu0 0.0
  %v685 = vand.u32 %v32, 4294901760
  %v686 = vsub.f32 %v32, %v685
  %v687 = vand.u32 %v686, 4294901760
  %688 = vmatpush1.msra.mxu0 %v687
  %689 = vmatprep.subr.mxu0 0.0
  %v690 = vand.u32 %v31, 4294901760
  %v691 = vsub.f32 %v31, %v690
  %v692 = vand.u32 %v691, 4294901760
  %693 = vmatpush1.msra.mxu0 %v692
  %694 = vmatprep.subr.mxu0 0.0
  %v695 = vand.u32 %v30, 4294901760
  %v696 = vsub.f32 %v30, %v695
  %v697 = vand.u32 %v696, 4294901760
  %698 = vmatpush1.msra.mxu0 %v697
  %699 = vmatprep.subr.mxu0 0.0
  %v700 = vand.u32 %v29, 4294901760
  %v701 = vsub.f32 %v29, %v700
  %v702 = vand.u32 %v701, 4294901760
  %703 = vmatpush1.msra.mxu0 %v702
  %704 = vmatprep.subr.mxu0 0.0
  %v705 = vand.u32 %v28, 4294901760
  %v706 = vsub.f32 %v28, %v705
  %v707 = vand.u32 %v706, 4294901760
  %708 = vmatpush1.msra.mxu0 %v707
  %709 = vmatprep.subr.mxu0 0.0
  %v710 = vand.u32 %v27, 4294901760
  %v711 = vsub.f32 %v27, %v710
  %v712 = vand.u32 %v711, 4294901760
  %713 = vmatpush1.msra.mxu0 %v712
  %714 = vmatprep.subr.mxu0 0.0
  %v715 = vand.u32 %v26, 4294901760
  %v716 = vsub.f32 %v26, %v715
  %v717 = vand.u32 %v716, 4294901760
  %718 = vmatpush1.msra.mxu0 %v717
  %719 = vmatprep.subr.mxu0 0.0
  %v720 = vand.u32 %v25, 4294901760
  %v721 = vsub.f32 %v25, %v720
  %v722 = vand.u32 %v721, 4294901760
  %723 = vmatpush1.msra.mxu0 %v722
  %724 = vmatprep.subr.mxu0 0.0
  %v725 = vand.u32 %v24, 4294901760
  %v726 = vsub.f32 %v24, %v725
  %v727 = vand.u32 %v726, 4294901760
  %728 = vmatpush1.msra.mxu0 %v727
  %729 = vmatprep.subr.mxu0 0.0
  %v730 = vand.u32 %v23, 4294901760
  %v731 = vsub.f32 %v23, %v730
  %v732 = vand.u32 %v731, 4294901760
  %733 = vmatpush1.msra.mxu0 %v732
  %734 = vmatprep.subr.mxu0 0.0
  %v735 = vand.u32 %v22, 4294901760
  %v736 = vsub.f32 %v22, %v735
  %v737 = vand.u32 %v736, 4294901760
  %738 = vmatpush1.msra.mxu0 %v737
  %739 = vmatprep.subr.mxu0 0.0
  %v740 = vand.u32 %v21, 4294901760
  %v741 = vsub.f32 %v21, %v740
  %v742 = vand.u32 %v741, 4294901760
  %743 = vmatpush1.msra.mxu0 %v742
  %744 = vmatprep.subr.mxu0 0.0
  %v745 = vand.u32 %v20, 4294901760
  %v746 = vsub.f32 %v20, %v745
  %v747 = vand.u32 %v746, 4294901760
  %748 = vmatpush1.msra.mxu0 %v747
  %749 = vmatprep.subr.mxu0 0.0
  %v750 = vand.u32 %v19, 4294901760
  %v751 = vsub.f32 %v19, %v750
  %v752 = vand.u32 %v751, 4294901760
  %753 = vmatpush1.msra.mxu0 %v752
  %754 = vmatprep.subr.mxu0 0.0
  %v755 = vand.u32 %v18, 4294901760
  %v756 = vsub.f32 %v18, %v755
  %v757 = vand.u32 %v756, 4294901760
  %758 = vmatpush1.msra.mxu0 %v757
  %759 = vmatprep.subr.mxu0 0.0
  %v760 = vand.u32 %v49, 4294901760
  %v761 = vsub.f32 %v49, %v760
  %v762 = vand.u32 %v761, 4294901760
  %763 = vmatpush2.msra.mxu0 %v762
  %764 = vmatprep.subr.mxu0 0.0
  %v765 = vand.u32 %v48, 4294901760
  %v766 = vsub.f32 %v48, %v765
  %v767 = vand.u32 %v766, 4294901760
  %768 = vmatpush2.msra.mxu0 %v767
  %769 = vmatprep.subr.mxu0 0.0
  %v770 = vand.u32 %v47, 4294901760
  %v771 = vsub.f32 %v47, %v770
  %v772 = vand.u32 %v771, 4294901760
  %773 = vmatpush2.msra.mxu0 %v772
  %774 = vmatprep.subr.mxu0 0.0
  %v775 = vand.u32 %v46, 4294901760
  %v776 = vsub.f32 %v46, %v775
  %v777 = vand.u32 %v776, 4294901760
  %778 = vmatpush2.msra.mxu0 %v777
  %779 = vmatprep.subr.mxu0 0.0
  %v780 = vand.u32 %v45, 4294901760
  %v781 = vsub.f32 %v45, %v780
  %v782 = vand.u32 %v781, 4294901760
  %783 = vmatpush2.msra.mxu0 %v782
  %784 = vmatprep.subr.mxu0 0.0
  %v785 = vand.u32 %v44, 4294901760
  %v786 = vsub.f32 %v44, %v785
  %v787 = vand.u32 %v786, 4294901760
  %788 = vmatpush2.msra.mxu0 %v787
  %789 = vmatprep.subr.mxu0 0.0
  %v790 = vand.u32 %v43, 4294901760
  %v791 = vsub.f32 %v43, %v790
  %v792 = vand.u32 %v791, 4294901760
  %793 = vmatpush2.msra.mxu0 %v792
  %794 = vmatprep.subr.mxu0 0.0
  %v795 = vand.u32 %v42, 4294901760
  %v796 = vsub.f32 %v42, %v795
  %v797 = vand.u32 %v796, 4294901760
  %798 = vmatpush2.msra.mxu0 %v797
  %799 = vmatprep.subr.mxu0 0.0
  %v800 = vand.u32 %v41, 4294901760
  %v801 = vsub.f32 %v41, %v800
  %v802 = vand.u32 %v801, 4294901760
  %803 = vmatpush2.msra.mxu0 %v802
  %804 = vmatprep.subr.mxu0 0.0
  %v805 = vand.u32 %v40, 4294901760
  %v806 = vsub.f32 %v40, %v805
  %v807 = vand.u32 %v806, 4294901760
  %808 = vmatpush2.msra.mxu0 %v807
  %809 = vmatprep.subr.mxu0 0.0
  %v810 = vand.u32 %v39, 4294901760
  %v811 = vsub.f32 %v39, %v810
  %v812 = vand.u32 %v811, 4294901760
  %813 = vmatpush2.msra.mxu0 %v812
  %814 = vmatprep.subr.mxu0 0.0
  %v815 = vand.u32 %v38, 4294901760
  %v816 = vsub.f32 %v38, %v815
  %v817 = vand.u32 %v816, 4294901760
  %818 = vmatpush2.msra.mxu0 %v817
  %819 = vmatprep.subr.mxu0 0.0
  %v820 = vand.u32 %v37, 4294901760
  %v821 = vsub.f32 %v37, %v820
  %v822 = vand.u32 %v821, 4294901760
  %823 = vmatpush2.msra.mxu0 %v822
  %824 = vmatprep.subr.mxu0 0.0
  %v825 = vand.u32 %v36, 4294901760
  %v826 = vsub.f32 %v36, %v825
  %v827 = vand.u32 %v826, 4294901760
  %828 = vmatpush2.msra.mxu0 %v827
  %829 = vmatprep.subr.mxu0 0.0
  %v830 = vand.u32 %v35, 4294901760
  %v831 = vsub.f32 %v35, %v830
  %v832 = vand.u32 %v831, 4294901760
  %833 = vmatpush2.msra.mxu0 %v832
  %834 = vmatprep.subr.mxu0 0.0
  %v835 = vand.u32 %v34, 4294901760
  %v836 = vsub.f32 %v34, %v835
  %v837 = vand.u32 %v836, 4294901760
  %838 = vmatpush2.msra.mxu0 %v837
  %v839 = vand.u32 %v15, 4294901760
  %840 = vmatprep.mubr.f32.mxu0 %v839
  %v841 = vand.u32 %v14, 4294901760
  %842 = vmatmul.mubr.f32.gmra.mxu0 %v841
  %v843 = vpop.f32.mrf.mxu0
  %v844 = vadd.f32 %v676, %v843
  %v845 = vpop.f32.mrf.mxu0
  %846 = vdwg.mxu0
  %847 = vmatprep.subr.mxu0 0.0
  %v848 = vand.u32 %v33, 4294901760
  %849 = vmatpush1.msra.mxu0 %v848
  %850 = vmatprep.subr.mxu0 0.0
  %v851 = vand.u32 %v32, 4294901760
  %852 = vmatpush1.msra.mxu0 %v851
  %853 = vmatprep.subr.mxu0 0.0
  %v854 = vand.u32 %v31, 4294901760
  %855 = vmatpush1.msra.mxu0 %v854
  %856 = vmatprep.subr.mxu0 0.0
  %v857 = vand.u32 %v30, 4294901760
  %858 = vmatpush1.msra.mxu0 %v857
  %859 = vmatprep.subr.mxu0 0.0
  %v860 = vand.u32 %v29, 4294901760
  %861 = vmatpush1.msra.mxu0 %v860
  %862 = vmatprep.subr.mxu0 0.0
  %v863 = vand.u32 %v28, 4294901760
  %864 = vmatpush1.msra.mxu0 %v863
  %865 = vmatprep.subr.mxu0 0.0
  %v866 = vand.u32 %v27, 4294901760
  %867 = vmatpush1.msra.mxu0 %v866
  %868 = vmatprep.subr.mxu0 0.0
  %v869 = vand.u32 %v26, 4294901760
  %870 = vmatpush1.msra.mxu0 %v869
  %871 = vmatprep.subr.mxu0 0.0
  %v872 = vand.u32 %v25, 4294901760
  %873 = vmatpush1.msra.mxu0 %v872
  %874 = vmatprep.subr.mxu0 0.0
  %v875 = vand.u32 %v24, 4294901760
  %876 = vmatpush1.msra.mxu0 %v875
  %877 = vmatprep.subr.mxu0 0.0
  %v878 = vand.u32 %v23, 4294901760
  %879 = vmatpush1.msra.mxu0 %v878
  %880 = vmatprep.subr.mxu0 0.0
  %v881 = vand.u32 %v22, 4294901760
  %882 = vmatpush1.msra.mxu0 %v881
  %883 = vmatprep.subr.mxu0 0.0
  %v884 = vand.u32 %v21, 4294901760
  %885 = vmatpush1.msra.mxu0 %v884
  %886 = vmatprep.subr.mxu0 0.0
  %v887 = vand.u32 %v20, 4294901760
  %888 = vmatpush1.msra.mxu0 %v887
  %889 = vmatprep.subr.mxu0 0.0
  %v890 = vand.u32 %v19, 4294901760
  %891 = vmatpush1.msra.mxu0 %v890
  %892 = vmatprep.subr.mxu0 0.0
  %v893 = vand.u32 %v18, 4294901760
  %894 = vmatpush1.msra.mxu0 %v893
  %895 = vmatprep.subr.mxu0 0.0
  %v896 = vand.u32 %v49, 4294901760
  %897 = vmatpush2.msra.mxu0 %v896
  %898 = vmatprep.subr.mxu0 0.0
  %v899 = vand.u32 %v48, 4294901760
  %900 = vmatpush2.msra.mxu0 %v899
  %901 = vmatprep.subr.mxu0 0.0
  %v902 = vand.u32 %v47, 4294901760
  %903 = vmatpush2.msra.mxu0 %v902
  %904 = vmatprep.subr.mxu0 0.0
  %v905 = vand.u32 %v46, 4294901760
  %906 = vmatpush2.msra.mxu0 %v905
  %907 = vmatprep.subr.mxu0 0.0
  %v908 = vand.u32 %v45, 4294901760
  %909 = vmatpush2.msra.mxu0 %v908
  %910 = vmatprep.subr.mxu0 0.0
  %v911 = vand.u32 %v44, 4294901760
  %912 = vmatpush2.msra.mxu0 %v911
  %913 = vmatprep.subr.mxu0 0.0
  %v914 = vand.u32 %v43, 4294901760
  %915 = vmatpush2.msra.mxu0 %v914
  %916 = vmatprep.subr.mxu0 0.0
  %v917 = vand.u32 %v42, 4294901760
  %918 = vmatpush2.msra.mxu0 %v917
  %919 = vmatprep.subr.mxu0 0.0
  %v920 = vand.u32 %v41, 4294901760
  %921 = vmatpush2.msra.mxu0 %v920
  %922 = vmatprep.subr.mxu0 0.0
  %v923 = vand.u32 %v40, 4294901760
  %924 = vmatpush2.msra.mxu0 %v923
  %925 = vmatprep.subr.mxu0 0.0
  %v926 = vand.u32 %v39, 4294901760
  %927 = vmatpush2.msra.mxu0 %v926
  %928 = vmatprep.subr.mxu0 0.0
  %v929 = vand.u32 %v38, 4294901760
  %930 = vmatpush2.msra.mxu0 %v929
  %931 = vmatprep.subr.mxu0 0.0
  %v932 = vand.u32 %v37, 4294901760
  %933 = vmatpush2.msra.mxu0 %v932
  %934 = vmatprep.subr.mxu0 0.0
  %v935 = vand.u32 %v36, 4294901760
  %936 = vmatpush2.msra.mxu0 %v935
  %937 = vmatprep.subr.mxu0 0.0
  %v938 = vand.u32 %v35, 4294901760
  %939 = vmatpush2.msra.mxu0 %v938
  %940 = vmatprep.subr.mxu0 0.0
  %v941 = vand.u32 %v34, 4294901760
  %942 = vmatpush2.msra.mxu0 %v941
  %v943 = vand.u32 %v15, 4294901760
  %944 = vmatprep.mubr.f32.mxu0 %v943
  %v945 = vand.u32 %v14, 4294901760
  %946 = vmatmul.mubr.f32.gmra.mxu0 %v945
  %v947 = vpop.f32.mrf.mxu0
  %v948 = vadd.f32 %v844, %v947
  %v949 = vpop.f32.mrf.mxu0
  %950 = vdwg.mxu0
  %951 = vmatprep.subr.mxu0 0.0
  %v952 = vand.u32 %v65, 4294901760
  %953 = vmatpush1.msra.mxu0 %v952
  %954 = vmatprep.subr.mxu0 0.0
  %v955 = vand.u32 %v64, 4294901760
  %956 = vmatpush1.msra.mxu0 %v955
  %957 = vmatprep.subr.mxu0 0.0
  %v958 = vand.u32 %v63, 4294901760
  %959 = vmatpush1.msra.mxu0 %v958
  %960 = vmatprep.subr.mxu0 0.0
  %v961 = vand.u32 %v62, 4294901760
  %962 = vmatpush1.msra.mxu0 %v961
  %963 = vmatprep.subr.mxu0 0.0
  %v964 = vand.u32 %v61, 4294901760
  %965 = vmatpush1.msra.mxu0 %v964
  %966 = vmatprep.subr.mxu0 0.0
  %v967 = vand.u32 %v60, 4294901760
  %968 = vmatpush1.msra.mxu0 %v967
  %969 = vmatprep.subr.mxu0 0.0
  %v970 = vand.u32 %v59, 4294901760
  %971 = vmatpush1.msra.mxu0 %v970
  %972 = vmatprep.subr.mxu0 0.0
  %v973 = vand.u32 %v58, 4294901760
  %974 = vmatpush1.msra.mxu0 %v973
  %975 = vmatprep.subr.mxu0 0.0
  %v976 = vand.u32 %v57, 4294901760
  %977 = vmatpush1.msra.mxu0 %v976
  %978 = vmatprep.subr.mxu0 0.0
  %v979 = vand.u32 %v56, 4294901760
  %980 = vmatpush1.msra.mxu0 %v979
  %981 = vmatprep.subr.mxu0 0.0
  %v982 = vand.u32 %v55, 4294901760
  %983 = vmatpush1.msra.mxu0 %v982
  %984 = vmatprep.subr.mxu0 0.0
  %v985 = vand.u32 %v54, 4294901760
  %986 = vmatpush1.msra.mxu0 %v985
  %987 = vmatprep.subr.mxu0 0.0
  %v988 = vand.u32 %v53, 4294901760
  %989 = vmatpush1.msra.mxu0 %v988
  %990 = vmatprep.subr.mxu0 0.0
  %v991 = vand.u32 %v52, 4294901760
  %992 = vmatpush1.msra.mxu0 %v991
  %993 = vmatprep.subr.mxu0 0.0
  %v994 = vand.u32 %v51, 4294901760
  %995 = vmatpush1.msra.mxu0 %v994
  %996 = vmatprep.subr.mxu0 0.0
  %v997 = vand.u32 %v50, 4294901760
  %998 = vmatpush1.msra.mxu0 %v997
  %999 = vmatprep.subr.mxu0 0.0
  %v1000 = vand.u32 %v81, 4294901760
  %1001 = vmatpush2.msra.mxu0 %v1000
  %1002 = vmatprep.subr.mxu0 0.0
  %v1003 = vand.u32 %v80, 4294901760
  %1004 = vmatpush2.msra.mxu0 %v1003
  %1005 = vmatprep.subr.mxu0 0.0
  %v1006 = vand.u32 %v79, 4294901760
  %1007 = vmatpush2.msra.mxu0 %v1006
  %1008 = vmatprep.subr.mxu0 0.0
  %v1009 = vand.u32 %v78, 4294901760
  %1010 = vmatpush2.msra.mxu0 %v1009
  %1011 = vmatprep.subr.mxu0 0.0
  %v1012 = vand.u32 %v77, 4294901760
  %1013 = vmatpush2.msra.mxu0 %v1012
  %1014 = vmatprep.subr.mxu0 0.0
  %v1015 = vand.u32 %v76, 4294901760
  %1016 = vmatpush2.msra.mxu0 %v1015
  %1017 = vmatprep.subr.mxu0 0.0
  %v1018 = vand.u32 %v75, 4294901760
  %1019 = vmatpush2.msra.mxu0 %v1018
  %1020 = vmatprep.subr.mxu0 0.0
  %v1021 = vand.u32 %v74, 4294901760
  %1022 = vmatpush2.msra.mxu0 %v1021
  %1023 = vmatprep.subr.mxu0 0.0
  %v1024 = vand.u32 %v73, 4294901760
  %1025 = vmatpush2.msra.mxu0 %v1024
  %1026 = vmatprep.subr.mxu0 0.0
  %v1027 = vand.u32 %v72, 4294901760
  %1028 = vmatpush2.msra.mxu0 %v1027
  %1029 = vmatprep.subr.mxu0 0.0
  %v1030 = vand.u32 %v71, 4294901760
  %1031 = vmatpush2.msra.mxu0 %v1030
  %1032 = vmatprep.subr.mxu0 0.0
  %v1033 = vand.u32 %v70, 4294901760
  %1034 = vmatpush2.msra.mxu0 %v1033
  %1035 = vmatprep.subr.mxu0 0.0
  %v1036 = vand.u32 %v69, 4294901760
  %1037 = vmatpush2.msra.mxu0 %v1036
  %1038 = vmatprep.subr.mxu0 0.0
  %v1039 = vand.u32 %v68, 4294901760
  %1040 = vmatpush2.msra.mxu0 %v1039
  %1041 = vmatprep.subr.mxu0 0.0
  %v1042 = vand.u32 %v67, 4294901760
  %1043 = vmatpush2.msra.mxu0 %v1042
  %1044 = vmatprep.subr.mxu0 0.0
  %v1045 = vand.u32 %v66, 4294901760
  %1046 = vmatpush2.msra.mxu0 %v1045
  %v1047 = vand.u32 %v17, 4294901760
  %v1048 = vsub.f32 %v17, %v1047
  %v1049 = vand.u32 %v1048, 4294901760
  %v1050 = vsub.f32 %v1048, %v1049
  %v1051 = vand.u32 %v1050, 4294901760
  %1052 = vmatprep.mubr.f32.mxu0 %v1051
  %v1053 = vand.u32 %v16, 4294901760
  %v1054 = vsub.f32 %v16, %v1053
  %v1055 = vand.u32 %v1054, 4294901760
  %v1056 = vsub.f32 %v1054, %v1055
  %v1057 = vand.u32 %v1056, 4294901760
  %1058 = vmatmul.mubr.f32.gmra.mxu0 %v1057
  %v1059 = vpop.f32.mrf.mxu0
  %v1060 = vadd.f32 %v948, %v1059
  %v1061 = vpop.f32.mrf.mxu0
  %1062 = vdwg.mxu0
  %1063 = vmatprep.subr.mxu0 0.0
  %v1064 = vand.u32 %v65, 4294901760
  %v1065 = vsub.f32 %v65, %v1064
  %v1066 = vand.u32 %v1065, 4294901760
  %v1067 = vsub.f32 %v1065, %v1066
  %v1068 = vand.u32 %v1067, 4294901760
  %1069 = vmatpush1.msra.mxu0 %v1068
  %1070 = vmatprep.subr.mxu0 0.0
  %v1071 = vand.u32 %v64, 4294901760
  %v1072 = vsub.f32 %v64, %v1071
  %v1073 = vand.u32 %v1072, 4294901760
  %v1074 = vsub.f32 %v1072, %v1073
  %v1075 = vand.u32 %v1074, 4294901760
  %1076 = vmatpush1.msra.mxu0 %v1075
  %1077 = vmatprep.subr.mxu0 0.0
  %v1078 = vand.u32 %v63, 4294901760
  %v1079 = vsub.f32 %v63, %v1078
  %v1080 = vand.u32 %v1079, 4294901760
  %v1081 = vsub.f32 %v1079, %v1080
  %v1082 = vand.u32 %v1081, 4294901760
  %1083 = vmatpush1.msra.mxu0 %v1082
  %1084 = vmatprep.subr.mxu0 0.0
  %v1085 = vand.u32 %v62, 4294901760
  %v1086 = vsub.f32 %v62, %v1085
  %v1087 = vand.u32 %v1086, 4294901760
  %v1088 = vsub.f32 %v1086, %v1087
  %v1089 = vand.u32 %v1088, 4294901760
  %1090 = vmatpush1.msra.mxu0 %v1089
  %1091 = vmatprep.subr.mxu0 0.0
  %v1092 = vand.u32 %v61, 4294901760
  %v1093 = vsub.f32 %v61, %v1092
  %v1094 = vand.u32 %v1093, 4294901760
  %v1095 = vsub.f32 %v1093, %v1094
  %v1096 = vand.u32 %v1095, 4294901760
  %1097 = vmatpush1.msra.mxu0 %v1096
  %1098 = vmatprep.subr.mxu0 0.0
  %v1099 = vand.u32 %v60, 4294901760
  %v1100 = vsub.f32 %v60, %v1099
  %v1101 = vand.u32 %v1100, 4294901760
  %v1102 = vsub.f32 %v1100, %v1101
  %v1103 = vand.u32 %v1102, 4294901760
  %1104 = vmatpush1.msra.mxu0 %v1103
  %1105 = vmatprep.subr.mxu0 0.0
  %v1106 = vand.u32 %v59, 4294901760
  %v1107 = vsub.f32 %v59, %v1106
  %v1108 = vand.u32 %v1107, 4294901760
  %v1109 = vsub.f32 %v1107, %v1108
  %v1110 = vand.u32 %v1109, 4294901760
  %1111 = vmatpush1.msra.mxu0 %v1110
  %1112 = vmatprep.subr.mxu0 0.0
  %v1113 = vand.u32 %v58, 4294901760
  %v1114 = vsub.f32 %v58, %v1113
  %v1115 = vand.u32 %v1114, 4294901760
  %v1116 = vsub.f32 %v1114, %v1115
  %v1117 = vand.u32 %v1116, 4294901760
  %1118 = vmatpush1.msra.mxu0 %v1117
  %1119 = vmatprep.subr.mxu0 0.0
  %v1120 = vand.u32 %v57, 4294901760
  %v1121 = vsub.f32 %v57, %v1120
  %v1122 = vand.u32 %v1121, 4294901760
  %v1123 = vsub.f32 %v1121, %v1122
  %v1124 = vand.u32 %v1123, 4294901760
  %1125 = vmatpush1.msra.mxu0 %v1124
  %1126 = vmatprep.subr.mxu0 0.0
  %v1127 = vand.u32 %v56, 4294901760
  %v1128 = vsub.f32 %v56, %v1127
  %v1129 = vand.u32 %v1128, 4294901760
  %v1130 = vsub.f32 %v1128, %v1129
  %v1131 = vand.u32 %v1130, 4294901760
  %1132 = vmatpush1.msra.mxu0 %v1131
  %1133 = vmatprep.subr.mxu0 0.0
  %v1134 = vand.u32 %v55, 4294901760
  %v1135 = vsub.f32 %v55, %v1134
  %v1136 = vand.u32 %v1135, 4294901760
  %v1137 = vsub.f32 %v1135, %v1136
  %v1138 = vand.u32 %v1137, 4294901760
  %1139 = vmatpush1.msra.mxu0 %v1138
  %1140 = vmatprep.subr.mxu0 0.0
  %v1141 = vand.u32 %v54, 4294901760
  %v1142 = vsub.f32 %v54, %v1141
  %v1143 = vand.u32 %v1142, 4294901760
  %v1144 = vsub.f32 %v1142, %v1143
  %v1145 = vand.u32 %v1144, 4294901760
  %1146 = vmatpush1.msra.mxu0 %v1145
  %1147 = vmatprep.subr.mxu0 0.0
  %v1148 = vand.u32 %v53, 4294901760
  %v1149 = vsub.f32 %v53, %v1148
  %v1150 = vand.u32 %v1149, 4294901760
  %v1151 = vsub.f32 %v1149, %v1150
  %v1152 = vand.u32 %v1151, 4294901760
  %1153 = vmatpush1.msra.mxu0 %v1152
  %1154 = vmatprep.subr.mxu0 0.0
  %v1155 = vand.u32 %v52, 4294901760
  %v1156 = vsub.f32 %v52, %v1155
  %v1157 = vand.u32 %v1156, 4294901760
  %v1158 = vsub.f32 %v1156, %v1157
  %v1159 = vand.u32 %v1158, 4294901760
  %1160 = vmatpush1.msra.mxu0 %v1159
  %1161 = vmatprep.subr.mxu0 0.0
  %v1162 = vand.u32 %v51, 4294901760
  %v1163 = vsub.f32 %v51, %v1162
  %v1164 = vand.u32 %v1163, 4294901760
  %v1165 = vsub.f32 %v1163, %v1164
  %v1166 = vand.u32 %v1165, 4294901760
  %1167 = vmatpush1.msra.mxu0 %v1166
  %1168 = vmatprep.subr.mxu0 0.0
  %v1169 = vand.u32 %v50, 4294901760
  %v1170 = vsub.f32 %v50, %v1169
  %v1171 = vand.u32 %v1170, 4294901760
  %v1172 = vsub.f32 %v1170, %v1171
  %v1173 = vand.u32 %v1172, 4294901760
  %1174 = vmatpush1.msra.mxu0 %v1173
  %1175 = vmatprep.subr.mxu0 0.0
  %v1176 = vand.u32 %v81, 4294901760
  %v1177 = vsub.f32 %v81, %v1176
  %v1178 = vand.u32 %v1177, 4294901760
  %v1179 = vsub.f32 %v1177, %v1178
  %v1180 = vand.u32 %v1179, 4294901760
  %1181 = vmatpush2.msra.mxu0 %v1180
  %1182 = vmatprep.subr.mxu0 0.0
  %v1183 = vand.u32 %v80, 4294901760
  %v1184 = vsub.f32 %v80, %v1183
  %v1185 = vand.u32 %v1184, 4294901760
  %v1186 = vsub.f32 %v1184, %v1185
  %v1187 = vand.u32 %v1186, 4294901760
  %1188 = vmatpush2.msra.mxu0 %v1187
  %1189 = vmatprep.subr.mxu0 0.0
  %v1190 = vand.u32 %v79, 4294901760
  %v1191 = vsub.f32 %v79, %v1190
  %v1192 = vand.u32 %v1191, 4294901760
  %v1193 = vsub.f32 %v1191, %v1192
  %v1194 = vand.u32 %v1193, 4294901760
  %1195 = vmatpush2.msra.mxu0 %v1194
  %1196 = vmatprep.subr.mxu0 0.0
  %v1197 = vand.u32 %v78, 4294901760
  %v1198 = vsub.f32 %v78, %v1197
  %v1199 = vand.u32 %v1198, 4294901760
  %v1200 = vsub.f32 %v1198, %v1199
  %v1201 = vand.u32 %v1200, 4294901760
  %1202 = vmatpush2.msra.mxu0 %v1201
  %1203 = vmatprep.subr.mxu0 0.0
  %v1204 = vand.u32 %v77, 4294901760
  %v1205 = vsub.f32 %v77, %v1204
  %v1206 = vand.u32 %v1205, 4294901760
  %v1207 = vsub.f32 %v1205, %v1206
  %v1208 = vand.u32 %v1207, 4294901760
  %1209 = vmatpush2.msra.mxu0 %v1208
  %1210 = vmatprep.subr.mxu0 0.0
  %v1211 = vand.u32 %v76, 4294901760
  %v1212 = vsub.f32 %v76, %v1211
  %v1213 = vand.u32 %v1212, 4294901760
  %v1214 = vsub.f32 %v1212, %v1213
  %v1215 = vand.u32 %v1214, 4294901760
  %1216 = vmatpush2.msra.mxu0 %v1215
  %1217 = vmatprep.subr.mxu0 0.0
  %v1218 = vand.u32 %v75, 4294901760
  %v1219 = vsub.f32 %v75, %v1218
  %v1220 = vand.u32 %v1219, 4294901760
  %v1221 = vsub.f32 %v1219, %v1220
  %v1222 = vand.u32 %v1221, 4294901760
  %1223 = vmatpush2.msra.mxu0 %v1222
  %1224 = vmatprep.subr.mxu0 0.0
  %v1225 = vand.u32 %v74, 4294901760
  %v1226 = vsub.f32 %v74, %v1225
  %v1227 = vand.u32 %v1226, 4294901760
  %v1228 = vsub.f32 %v1226, %v1227
  %v1229 = vand.u32 %v1228, 4294901760
  %1230 = vmatpush2.msra.mxu0 %v1229
  %1231 = vmatprep.subr.mxu0 0.0
  %v1232 = vand.u32 %v73, 4294901760
  %v1233 = vsub.f32 %v73, %v1232
  %v1234 = vand.u32 %v1233, 4294901760
  %v1235 = vsub.f32 %v1233, %v1234
  %v1236 = vand.u32 %v1235, 4294901760
  %1237 = vmatpush2.msra.mxu0 %v1236
  %1238 = vmatprep.subr.mxu0 0.0
  %v1239 = vand.u32 %v72, 4294901760
  %v1240 = vsub.f32 %v72, %v1239
  %v1241 = vand.u32 %v1240, 4294901760
  %v1242 = vsub.f32 %v1240, %v1241
  %v1243 = vand.u32 %v1242, 4294901760
  %1244 = vmatpush2.msra.mxu0 %v1243
  %1245 = vmatprep.subr.mxu0 0.0
  %v1246 = vand.u32 %v71, 4294901760
  %v1247 = vsub.f32 %v71, %v1246
  %v1248 = vand.u32 %v1247, 4294901760
  %v1249 = vsub.f32 %v1247, %v1248
  %v1250 = vand.u32 %v1249, 4294901760
  %1251 = vmatpush2.msra.mxu0 %v1250
  %1252 = vmatprep.subr.mxu0 0.0
  %v1253 = vand.u32 %v70, 4294901760
  %v1254 = vsub.f32 %v70, %v1253
  %v1255 = vand.u32 %v1254, 4294901760
  %v1256 = vsub.f32 %v1254, %v1255
  %v1257 = vand.u32 %v1256, 4294901760
  %1258 = vmatpush2.msra.mxu0 %v1257
  %1259 = vmatprep.subr.mxu0 0.0
  %v1260 = vand.u32 %v69, 4294901760
  %v1261 = vsub.f32 %v69, %v1260
  %v1262 = vand.u32 %v1261, 4294901760
  %v1263 = vsub.f32 %v1261, %v1262
  %v1264 = vand.u32 %v1263, 4294901760
  %1265 = vmatpush2.msra.mxu0 %v1264
  %1266 = vmatprep.subr.mxu0 0.0
  %v1267 = vand.u32 %v68, 4294901760
  %v1268 = vsub.f32 %v68, %v1267
  %v1269 = vand.u32 %v1268, 4294901760
  %v1270 = vsub.f32 %v1268, %v1269
  %v1271 = vand.u32 %v1270, 4294901760
  %1272 = vmatpush2.msra.mxu0 %v1271
  %1273 = vmatprep.subr.mxu0 0.0
  %v1274 = vand.u32 %v67, 4294901760
  %v1275 = vsub.f32 %v67, %v1274
  %v1276 = vand.u32 %v1275, 4294901760
  %v1277 = vsub.f32 %v1275, %v1276
  %v1278 = vand.u32 %v1277, 4294901760
  %1279 = vmatpush2.msra.mxu0 %v1278
  %1280 = vmatprep.subr.mxu0 0.0
  %v1281 = vand.u32 %v66, 4294901760
  %v1282 = vsub.f32 %v66, %v1281
  %v1283 = vand.u32 %v1282, 4294901760
  %v1284 = vsub.f32 %v1282, %v1283
  %v1285 = vand.u32 %v1284, 4294901760
  %1286 = vmatpush2.msra.mxu0 %v1285
  %v1287 = vand.u32 %v17, 4294901760
  %1288 = vmatprep.mubr.f32.mxu0 %v1287
  %v1289 = vand.u32 %v16, 4294901760
  %1290 = vmatmul.mubr.f32.gmra.mxu0 %v1289
  %v1291 = vpop.f32.mrf.mxu0
  %v1292 = vadd.f32 %v1060, %v1291
  %v1293 = vpop.f32.mrf.mxu0
  %1294 = vdwg.mxu0
  %1295 = vmatprep.subr.mxu0 0.0
  %v1296 = vand.u32 %v65, 4294901760
  %v1297 = vsub.f32 %v65, %v1296
  %1298 = vmatpush1.msra.mxu0 %v1297
  %1299 = vmatprep.subr.mxu0 0.0
  %v1300 = vand.u32 %v64, 4294901760
  %v1301 = vsub.f32 %v64, %v1300
  %1302 = vmatpush1.msra.mxu0 %v1301
  %1303 = vmatprep.subr.mxu0 0.0
  %v1304 = vand.u32 %v63, 4294901760
  %v1305 = vsub.f32 %v63, %v1304
  %1306 = vmatpush1.msra.mxu0 %v1305
  %1307 = vmatprep.subr.mxu0 0.0
  %v1308 = vand.u32 %v62, 4294901760
  %v1309 = vsub.f32 %v62, %v1308
  %1310 = vmatpush1.msra.mxu0 %v1309
  %1311 = vmatprep.subr.mxu0 0.0
  %v1312 = vand.u32 %v61, 4294901760
  %v1313 = vsub.f32 %v61, %v1312
  %1314 = vmatpush1.msra.mxu0 %v1313
  %1315 = vmatprep.subr.mxu0 0.0
  %v1316 = vand.u32 %v60, 4294901760
  %v1317 = vsub.f32 %v60, %v1316
  %1318 = vmatpush1.msra.mxu0 %v1317
  %1319 = vmatprep.subr.mxu0 0.0
  %v1320 = vand.u32 %v59, 4294901760
  %v1321 = vsub.f32 %v59, %v1320
  %1322 = vmatpush1.msra.mxu0 %v1321
  %1323 = vmatprep.subr.mxu0 0.0
  %v1324 = vand.u32 %v58, 4294901760
  %v1325 = vsub.f32 %v58, %v1324
  %1326 = vmatpush1.msra.mxu0 %v1325
  %1327 = vmatprep.subr.mxu0 0.0
  %v1328 = vand.u32 %v57, 4294901760
  %v1329 = vsub.f32 %v57, %v1328
  %1330 = vmatpush1.msra.mxu0 %v1329
  %1331 = vmatprep.subr.mxu0 0.0
  %v1332 = vand.u32 %v56, 4294901760
  %v1333 = vsub.f32 %v56, %v1332
  %1334 = vmatpush1.msra.mxu0 %v1333
  %1335 = vmatprep.subr.mxu0 0.0
  %v1336 = vand.u32 %v55, 4294901760
  %v1337 = vsub.f32 %v55, %v1336
  %1338 = vmatpush1.msra.mxu0 %v1337
  %1339 = vmatprep.subr.mxu0 0.0
  %v1340 = vand.u32 %v54, 4294901760
  %v1341 = vsub.f32 %v54, %v1340
  %1342 = vmatpush1.msra.mxu0 %v1341
  %1343 = vmatprep.subr.mxu0 0.0
  %v1344 = vand.u32 %v53, 4294901760
  %v1345 = vsub.f32 %v53, %v1344
  %1346 = vmatpush1.msra.mxu0 %v1345
  %1347 = vmatprep.subr.mxu0 0.0
  %v1348 = vand.u32 %v52, 4294901760
  %v1349 = vsub.f32 %v52, %v1348
  %1350 = vmatpush1.msra.mxu0 %v1349
  %1351 = vmatprep.subr.mxu0 0.0
  %v1352 = vand.u32 %v51, 4294901760
  %v1353 = vsub.f32 %v51, %v1352
  %1354 = vmatpush1.msra.mxu0 %v1353
  %1355 = vmatprep.subr.mxu0 0.0
  %v1356 = vand.u32 %v50, 4294901760
  %v1357 = vsub.f32 %v50, %v1356
  %1358 = vmatpush1.msra.mxu0 %v1357
  %1359 = vmatprep.subr.mxu0 0.0
  %v1360 = vand.u32 %v81, 4294901760
  %v1361 = vsub.f32 %v81, %v1360
  %1362 = vmatpush2.msra.mxu0 %v1361
  %1363 = vmatprep.subr.mxu0 0.0
  %v1364 = vand.u32 %v80, 4294901760
  %v1365 = vsub.f32 %v80, %v1364
  %1366 = vmatpush2.msra.mxu0 %v1365
  %1367 = vmatprep.subr.mxu0 0.0
  %v1368 = vand.u32 %v79, 4294901760
  %v1369 = vsub.f32 %v79, %v1368
  %1370 = vmatpush2.msra.mxu0 %v1369
  %1371 = vmatprep.subr.mxu0 0.0
  %v1372 = vand.u32 %v78, 4294901760
  %v1373 = vsub.f32 %v78, %v1372
  %1374 = vmatpush2.msra.mxu0 %v1373
  %1375 = vmatprep.subr.mxu0 0.0
  %v1376 = vand.u32 %v77, 4294901760
  %v1377 = vsub.f32 %v77, %v1376
  %1378 = vmatpush2.msra.mxu0 %v1377
  %1379 = vmatprep.subr.mxu0 0.0
  %v1380 = vand.u32 %v76, 4294901760
  %v1381 = vsub.f32 %v76, %v1380
  %1382 = vmatpush2.msra.mxu0 %v1381
  %1383 = vmatprep.subr.mxu0 0.0
  %v1384 = vand.u32 %v75, 4294901760
  %v1385 = vsub.f32 %v75, %v1384
  %1386 = vmatpush2.msra.mxu0 %v1385
  %1387 = vmatprep.subr.mxu0 0.0
  %v1388 = vand.u32 %v74, 4294901760
  %v1389 = vsub.f32 %v74, %v1388
  %1390 = vmatpush2.msra.mxu0 %v1389
  %1391 = vmatprep.subr.mxu0 0.0
  %v1392 = vand.u32 %v73, 4294901760
  %v1393 = vsub.f32 %v73, %v1392
  %1394 = vmatpush2.msra.mxu0 %v1393
  %1395 = vmatprep.subr.mxu0 0.0
  %v1396 = vand.u32 %v72, 4294901760
  %v1397 = vsub.f32 %v72, %v1396
  %1398 = vmatpush2.msra.mxu0 %v1397
  %1399 = vmatprep.subr.mxu0 0.0
  %v1400 = vand.u32 %v71, 4294901760
  %v1401 = vsub.f32 %v71, %v1400
  %1402 = vmatpush2.msra.mxu0 %v1401
  %1403 = vmatprep.subr.mxu0 0.0
  %v1404 = vand.u32 %v70, 4294901760
  %v1405 = vsub.f32 %v70, %v1404
  %1406 = vmatpush2.msra.mxu0 %v1405
  %1407 = vmatprep.subr.mxu0 0.0
  %v1408 = vand.u32 %v69, 4294901760
  %v1409 = vsub.f32 %v69, %v1408
  %1410 = vmatpush2.msra.mxu0 %v1409
  %1411 = vmatprep.subr.mxu0 0.0
  %v1412 = vand.u32 %v68, 4294901760
  %v1413 = vsub.f32 %v68, %v1412
  %1414 = vmatpush2.msra.mxu0 %v1413
  %1415 = vmatprep.subr.mxu0 0.0
  %v1416 = vand.u32 %v67, 4294901760
  %v1417 = vsub.f32 %v67, %v1416
  %1418 = vmatpush2.msra.mxu0 %v1417
  %1419 = vmatprep.subr.mxu0 0.0
  %v1420 = vand.u32 %v66, 4294901760
  %v1421 = vsub.f32 %v66, %v1420
  %1422 = vmatpush2.msra.mxu0 %v1421
  %v1423 = vand.u32 %v17, 4294901760
  %v1424 = vsub.f32 %v17, %v1423
  %1425 = vmatprep.mubr.f32.mxu0 %v1424
  %v1426 = vand.u32 %v16, 4294901760
  %v1427 = vsub.f32 %v16, %v1426
  %1428 = vmatmul.mubr.f32.gmra.mxu0 %v1427
  %v1429 = vpop.f32.mrf.mxu0
  %v1430 = vadd.f32 %v1292, %v1429
  %v1431 = vpop.f32.mrf.mxu0
  %1432 = vdwg.mxu0
  %1433 = vmatprep.subr.mxu0 0.0
  %v1434 = vand.u32 %v65, 4294901760
  %1435 = vmatpush1.msra.mxu0 %v1434
  %1436 = vmatprep.subr.mxu0 0.0
  %v1437 = vand.u32 %v64, 4294901760
  %1438 = vmatpush1.msra.mxu0 %v1437
  %1439 = vmatprep.subr.mxu0 0.0
  %v1440 = vand.u32 %v63, 4294901760
  %1441 = vmatpush1.msra.mxu0 %v1440
  %1442 = vmatprep.subr.mxu0 0.0
  %v1443 = vand.u32 %v62, 4294901760
  %1444 = vmatpush1.msra.mxu0 %v1443
  %1445 = vmatprep.subr.mxu0 0.0
  %v1446 = vand.u32 %v61, 4294901760
  %1447 = vmatpush1.msra.mxu0 %v1446
  %1448 = vmatprep.subr.mxu0 0.0
  %v1449 = vand.u32 %v60, 4294901760
  %1450 = vmatpush1.msra.mxu0 %v1449
  %1451 = vmatprep.subr.mxu0 0.0
  %v1452 = vand.u32 %v59, 4294901760
  %1453 = vmatpush1.msra.mxu0 %v1452
  %1454 = vmatprep.subr.mxu0 0.0
  %v1455 = vand.u32 %v58, 4294901760
  %1456 = vmatpush1.msra.mxu0 %v1455
  %1457 = vmatprep.subr.mxu0 0.0
  %v1458 = vand.u32 %v57, 4294901760
  %1459 = vmatpush1.msra.mxu0 %v1458
  %1460 = vmatprep.subr.mxu0 0.0
  %v1461 = vand.u32 %v56, 4294901760
  %1462 = vmatpush1.msra.mxu0 %v1461
  %1463 = vmatprep.subr.mxu0 0.0
  %v1464 = vand.u32 %v55, 4294901760
  %1465 = vmatpush1.msra.mxu0 %v1464
  %1466 = vmatprep.subr.mxu0 0.0
  %v1467 = vand.u32 %v54, 4294901760
  %1468 = vmatpush1.msra.mxu0 %v1467
  %1469 = vmatprep.subr.mxu0 0.0
  %v1470 = vand.u32 %v53, 4294901760
  %1471 = vmatpush1.msra.mxu0 %v1470
  %1472 = vmatprep.subr.mxu0 0.0
  %v1473 = vand.u32 %v52, 4294901760
  %1474 = vmatpush1.msra.mxu0 %v1473
  %1475 = vmatprep.subr.mxu0 0.0
  %v1476 = vand.u32 %v51, 4294901760
  %1477 = vmatpush1.msra.mxu0 %v1476
  %1478 = vmatprep.subr.mxu0 0.0
  %v1479 = vand.u32 %v50, 4294901760
  %1480 = vmatpush1.msra.mxu0 %v1479
  %1481 = vmatprep.subr.mxu0 0.0
  %v1482 = vand.u32 %v81, 4294901760
  %1483 = vmatpush2.msra.mxu0 %v1482
  %1484 = vmatprep.subr.mxu0 0.0
  %v1485 = vand.u32 %v80, 4294901760
  %1486 = vmatpush2.msra.mxu0 %v1485
  %1487 = vmatprep.subr.mxu0 0.0
  %v1488 = vand.u32 %v79, 4294901760
  %1489 = vmatpush2.msra.mxu0 %v1488
  %1490 = vmatprep.subr.mxu0 0.0
  %v1491 = vand.u32 %v78, 4294901760
  %1492 = vmatpush2.msra.mxu0 %v1491
  %1493 = vmatprep.subr.mxu0 0.0
  %v1494 = vand.u32 %v77, 4294901760
  %1495 = vmatpush2.msra.mxu0 %v1494
  %1496 = vmatprep.subr.mxu0 0.0
  %v1497 = vand.u32 %v76, 4294901760
  %1498 = vmatpush2.msra.mxu0 %v1497
  %1499 = vmatprep.subr.mxu0 0.0
  %v1500 = vand.u32 %v75, 4294901760
  %1501 = vmatpush2.msra.mxu0 %v1500
  %1502 = vmatprep.subr.mxu0 0.0
  %v1503 = vand.u32 %v74, 4294901760
  %1504 = vmatpush2.msra.mxu0 %v1503
  %1505 = vmatprep.subr.mxu0 0.0
  %v1506 = vand.u32 %v73, 4294901760
  %1507 = vmatpush2.msra.mxu0 %v1506
  %1508 = vmatprep.subr.mxu0 0.0
  %v1509 = vand.u32 %v72, 4294901760
  %1510 = vmatpush2.msra.mxu0 %v1509
  %1511 = vmatprep.subr.mxu0 0.0
  %v1512 = vand.u32 %v71, 4294901760
  %1513 = vmatpush2.msra.mxu0 %v1512
  %1514 = vmatprep.subr.mxu0 0.0
  %v1515 = vand.u32 %v70, 4294901760
  %1516 = vmatpush2.msra.mxu0 %v1515
  %1517 = vmatprep.subr.mxu0 0.0
  %v1518 = vand.u32 %v69, 4294901760
  %1519 = vmatpush2.msra.mxu0 %v1518
  %1520 = vmatprep.subr.mxu0 0.0
  %v1521 = vand.u32 %v68, 4294901760
  %1522 = vmatpush2.msra.mxu0 %v1521
  %1523 = vmatprep.subr.mxu0 0.0
  %v1524 = vand.u32 %v67, 4294901760
  %1525 = vmatpush2.msra.mxu0 %v1524
  %1526 = vmatprep.subr.mxu0 0.0
  %v1527 = vand.u32 %v66, 4294901760
  %1528 = vmatpush2.msra.mxu0 %v1527
  %v1529 = vand.u32 %v17, 4294901760
  %v1530 = vsub.f32 %v17, %v1529
  %v1531 = vand.u32 %v1530, 4294901760
  %1532 = vmatprep.mubr.f32.mxu0 %v1531
  %v1533 = vand.u32 %v16, 4294901760
  %v1534 = vsub.f32 %v16, %v1533
  %v1535 = vand.u32 %v1534, 4294901760
  %1536 = vmatmul.mubr.f32.gmra.mxu0 %v1535
  %v1537 = vpop.f32.mrf.mxu0
  %v1538 = vadd.f32 %v1430, %v1537
  %v1539 = vpop.f32.mrf.mxu0
  %1540 = vdwg.mxu0
  %1541 = vmatprep.subr.mxu0 0.0
  %v1542 = vand.u32 %v65, 4294901760
  %v1543 = vsub.f32 %v65, %v1542
  %v1544 = vand.u32 %v1543, 4294901760
  %1545 = vmatpush1.msra.mxu0 %v1544
  %1546 = vmatprep.subr.mxu0 0.0
  %v1547 = vand.u32 %v64, 4294901760
  %v1548 = vsub.f32 %v64, %v1547
  %v1549 = vand.u32 %v1548, 4294901760
  %1550 = vmatpush1.msra.mxu0 %v1549
  %1551 = vmatprep.subr.mxu0 0.0
  %v1552 = vand.u32 %v63, 4294901760
  %v1553 = vsub.f32 %v63, %v1552
  %v1554 = vand.u32 %v1553, 4294901760
  %1555 = vmatpush1.msra.mxu0 %v1554
  %1556 = vmatprep.subr.mxu0 0.0
  %v1557 = vand.u32 %v62, 4294901760
  %v1558 = vsub.f32 %v62, %v1557
  %v1559 = vand.u32 %v1558, 4294901760
  %1560 = vmatpush1.msra.mxu0 %v1559
  %1561 = vmatprep.subr.mxu0 0.0
  %v1562 = vand.u32 %v61, 4294901760
  %v1563 = vsub.f32 %v61, %v1562
  %v1564 = vand.u32 %v1563, 4294901760
  %1565 = vmatpush1.msra.mxu0 %v1564
  %1566 = vmatprep.subr.mxu0 0.0
  %v1567 = vand.u32 %v60, 4294901760
  %v1568 = vsub.f32 %v60, %v1567
  %v1569 = vand.u32 %v1568, 4294901760
  %1570 = vmatpush1.msra.mxu0 %v1569
  %1571 = vmatprep.subr.mxu0 0.0
  %v1572 = vand.u32 %v59, 4294901760
  %v1573 = vsub.f32 %v59, %v1572
  %v1574 = vand.u32 %v1573, 4294901760
  %1575 = vmatpush1.msra.mxu0 %v1574
  %1576 = vmatprep.subr.mxu0 0.0
  %v1577 = vand.u32 %v58, 4294901760
  %v1578 = vsub.f32 %v58, %v1577
  %v1579 = vand.u32 %v1578, 4294901760
  %1580 = vmatpush1.msra.mxu0 %v1579
  %1581 = vmatprep.subr.mxu0 0.0
  %v1582 = vand.u32 %v57, 4294901760
  %v1583 = vsub.f32 %v57, %v1582
  %v1584 = vand.u32 %v1583, 4294901760
  %1585 = vmatpush1.msra.mxu0 %v1584
  %1586 = vmatprep.subr.mxu0 0.0
  %v1587 = vand.u32 %v56, 4294901760
  %v1588 = vsub.f32 %v56, %v1587
  %v1589 = vand.u32 %v1588, 4294901760
  %1590 = vmatpush1.msra.mxu0 %v1589
  %1591 = vmatprep.subr.mxu0 0.0
  %v1592 = vand.u32 %v55, 4294901760
  %v1593 = vsub.f32 %v55, %v1592
  %v1594 = vand.u32 %v1593, 4294901760
  %1595 = vmatpush1.msra.mxu0 %v1594
  %1596 = vmatprep.subr.mxu0 0.0
  %v1597 = vand.u32 %v54, 4294901760
  %v1598 = vsub.f32 %v54, %v1597
  %v1599 = vand.u32 %v1598, 4294901760
  %1600 = vmatpush1.msra.mxu0 %v1599
  %1601 = vmatprep.subr.mxu0 0.0
  %v1602 = vand.u32 %v53, 4294901760
  %v1603 = vsub.f32 %v53, %v1602
  %v1604 = vand.u32 %v1603, 4294901760
  %1605 = vmatpush1.msra.mxu0 %v1604
  %1606 = vmatprep.subr.mxu0 0.0
  %v1607 = vand.u32 %v52, 4294901760
  %v1608 = vsub.f32 %v52, %v1607
  %v1609 = vand.u32 %v1608, 4294901760
  %1610 = vmatpush1.msra.mxu0 %v1609
  %1611 = vmatprep.subr.mxu0 0.0
  %v1612 = vand.u32 %v51, 4294901760
  %v1613 = vsub.f32 %v51, %v1612
  %v1614 = vand.u32 %v1613, 4294901760
  %1615 = vmatpush1.msra.mxu0 %v1614
  %1616 = vmatprep.subr.mxu0 0.0
  %v1617 = vand.u32 %v50, 4294901760
  %v1618 = vsub.f32 %v50, %v1617
  %v1619 = vand.u32 %v1618, 4294901760
  %1620 = vmatpush1.msra.mxu0 %v1619
  %1621 = vmatprep.subr.mxu0 0.0
  %v1622 = vand.u32 %v81, 4294901760
  %v1623 = vsub.f32 %v81, %v1622
  %v1624 = vand.u32 %v1623, 4294901760
  %1625 = vmatpush2.msra.mxu0 %v1624
  %1626 = vmatprep.subr.mxu0 0.0
  %v1627 = vand.u32 %v80, 4294901760
  %v1628 = vsub.f32 %v80, %v1627
  %v1629 = vand.u32 %v1628, 4294901760
  %1630 = vmatpush2.msra.mxu0 %v1629
  %1631 = vmatprep.subr.mxu0 0.0
  %v1632 = vand.u32 %v79, 4294901760
  %v1633 = vsub.f32 %v79, %v1632
  %v1634 = vand.u32 %v1633, 4294901760
  %1635 = vmatpush2.msra.mxu0 %v1634
  %1636 = vmatprep.subr.mxu0 0.0
  %v1637 = vand.u32 %v78, 4294901760
  %v1638 = vsub.f32 %v78, %v1637
  %v1639 = vand.u32 %v1638, 4294901760
  %1640 = vmatpush2.msra.mxu0 %v1639
  %1641 = vmatprep.subr.mxu0 0.0
  %v1642 = vand.u32 %v77, 4294901760
  %v1643 = vsub.f32 %v77, %v1642
  %v1644 = vand.u32 %v1643, 4294901760
  %1645 = vmatpush2.msra.mxu0 %v1644
  %1646 = vmatprep.subr.mxu0 0.0
  %v1647 = vand.u32 %v76, 4294901760
  %v1648 = vsub.f32 %v76, %v1647
  %v1649 = vand.u32 %v1648, 4294901760
  %1650 = vmatpush2.msra.mxu0 %v1649
  %1651 = vmatprep.subr.mxu0 0.0
  %v1652 = vand.u32 %v75, 4294901760
  %v1653 = vsub.f32 %v75, %v1652
  %v1654 = vand.u32 %v1653, 4294901760
  %1655 = vmatpush2.msra.mxu0 %v1654
  %1656 = vmatprep.subr.mxu0 0.0
  %v1657 = vand.u32 %v74, 4294901760
  %v1658 = vsub.f32 %v74, %v1657
  %v1659 = vand.u32 %v1658, 4294901760
  %1660 = vmatpush2.msra.mxu0 %v1659
  %1661 = vmatprep.subr.mxu0 0.0
  %v1662 = vand.u32 %v73, 4294901760
  %v1663 = vsub.f32 %v73, %v1662
  %v1664 = vand.u32 %v1663, 4294901760
  %1665 = vmatpush2.msra.mxu0 %v1664
  %1666 = vmatprep.subr.mxu0 0.0
  %v1667 = vand.u32 %v72, 4294901760
  %v1668 = vsub.f32 %v72, %v1667
  %v1669 = vand.u32 %v1668, 4294901760
  %1670 = vmatpush2.msra.mxu0 %v1669
  %1671 = vmatprep.subr.mxu0 0.0
  %v1672 = vand.u32 %v71, 4294901760
  %v1673 = vsub.f32 %v71, %v1672
  %v1674 = vand.u32 %v1673, 4294901760
  %1675 = vmatpush2.msra.mxu0 %v1674
  %1676 = vmatprep.subr.mxu0 0.0
  %v1677 = vand.u32 %v70, 4294901760
  %v1678 = vsub.f32 %v70, %v1677
  %v1679 = vand.u32 %v1678, 4294901760
  %1680 = vmatpush2.msra.mxu0 %v1679
  %1681 = vmatprep.subr.mxu0 0.0
  %v1682 = vand.u32 %v69, 4294901760
  %v1683 = vsub.f32 %v69, %v1682
  %v1684 = vand.u32 %v1683, 4294901760
  %1685 = vmatpush2.msra.mxu0 %v1684
  %1686 = vmatprep.subr.mxu0 0.0
  %v1687 = vand.u32 %v68, 4294901760
  %v1688 = vsub.f32 %v68, %v1687
  %v1689 = vand.u32 %v1688, 4294901760
  %1690 = vmatpush2.msra.mxu0 %v1689
  %1691 = vmatprep.subr.mxu0 0.0
  %v1692 = vand.u32 %v67, 4294901760
  %v1693 = vsub.f32 %v67, %v1692
  %v1694 = vand.u32 %v1693, 4294901760
  %1695 = vmatpush2.msra.mxu0 %v1694
  %1696 = vmatprep.subr.mxu0 0.0
  %v1697 = vand.u32 %v66, 4294901760
  %v1698 = vsub.f32 %v66, %v1697
  %v1699 = vand.u32 %v1698, 4294901760
  %1700 = vmatpush2.msra.mxu0 %v1699
  %v1701 = vand.u32 %v17, 4294901760
  %1702 = vmatprep.mubr.f32.mxu0 %v1701
  %v1703 = vand.u32 %v16, 4294901760
  %1704 = vmatmul.mubr.f32.gmra.mxu0 %v1703
  %v1705 = vpop.f32.mrf.mxu0
  %v1706 = vadd.f32 %v1538, %v1705
  %v1707 = vpop.f32.mrf.mxu0
  %1708 = vdwg.mxu0
  %1709 = vmatprep.subr.mxu0 0.0
  %v1710 = vand.u32 %v65, 4294901760
  %1711 = vmatpush1.msra.mxu0 %v1710
  %1712 = vmatprep.subr.mxu0 0.0
  %v1713 = vand.u32 %v64, 4294901760
  %1714 = vmatpush1.msra.mxu0 %v1713
  %1715 = vmatprep.subr.mxu0 0.0
  %v1716 = vand.u32 %v63, 4294901760
  %1717 = vmatpush1.msra.mxu0 %v1716
  %1718 = vmatprep.subr.mxu0 0.0
  %v1719 = vand.u32 %v62, 4294901760
  %1720 = vmatpush1.msra.mxu0 %v1719
  %1721 = vmatprep.subr.mxu0 0.0
  %v1722 = vand.u32 %v61, 4294901760
  %1723 = vmatpush1.msra.mxu0 %v1722
  %1724 = vmatprep.subr.mxu0 0.0
  %v1725 = vand.u32 %v60, 4294901760
  %1726 = vmatpush1.msra.mxu0 %v1725
  %1727 = vmatprep.subr.mxu0 0.0
  %v1728 = vand.u32 %v59, 4294901760
  %1729 = vmatpush1.msra.mxu0 %v1728
  %1730 = vmatprep.subr.mxu0 0.0
  %v1731 = vand.u32 %v58, 4294901760
  %1732 = vmatpush1.msra.mxu0 %v1731
  %1733 = vmatprep.subr.mxu0 0.0
  %v1734 = vand.u32 %v57, 4294901760
  %1735 = vmatpush1.msra.mxu0 %v1734
  %1736 = vmatprep.subr.mxu0 0.0
  %v1737 = vand.u32 %v56, 4294901760
  %1738 = vmatpush1.msra.mxu0 %v1737
  %1739 = vmatprep.subr.mxu0 0.0
  %v1740 = vand.u32 %v55, 4294901760
  %1741 = vmatpush1.msra.mxu0 %v1740
  %1742 = vmatprep.subr.mxu0 0.0
  %v1743 = vand.u32 %v54, 4294901760
  %1744 = vmatpush1.msra.mxu0 %v1743
  %1745 = vmatprep.subr.mxu0 0.0
  %v1746 = vand.u32 %v53, 4294901760
  %1747 = vmatpush1.msra.mxu0 %v1746
  %1748 = vmatprep.subr.mxu0 0.0
  %v1749 = vand.u32 %v52, 4294901760
  %1750 = vmatpush1.msra.mxu0 %v1749
  %1751 = vmatprep.subr.mxu0 0.0
  %v1752 = vand.u32 %v51, 4294901760
  %1753 = vmatpush1.msra.mxu0 %v1752
  %1754 = vmatprep.subr.mxu0 0.0
  %v1755 = vand.u32 %v50, 4294901760
  %1756 = vmatpush1.msra.mxu0 %v1755
  %1757 = vmatprep.subr.mxu0 0.0
  %v1758 = vand.u32 %v81, 4294901760
  %1759 = vmatpush2.msra.mxu0 %v1758
  %1760 = vmatprep.subr.mxu0 0.0
  %v1761 = vand.u32 %v80, 4294901760
  %1762 = vmatpush2.msra.mxu0 %v1761
  %1763 = vmatprep.subr.mxu0 0.0
  %v1764 = vand.u32 %v79, 4294901760
  %1765 = vmatpush2.msra.mxu0 %v1764
  %1766 = vmatprep.subr.mxu0 0.0
  %v1767 = vand.u32 %v78, 4294901760
  %1768 = vmatpush2.msra.mxu0 %v1767
  %1769 = vmatprep.subr.mxu0 0.0
  %v1770 = vand.u32 %v77, 4294901760
  %1771 = vmatpush2.msra.mxu0 %v1770
  %1772 = vmatprep.subr.mxu0 0.0
  %v1773 = vand.u32 %v76, 4294901760
  %1774 = vmatpush2.msra.mxu0 %v1773
  %1775 = vmatprep.subr.mxu0 0.0
  %v1776 = vand.u32 %v75, 4294901760
  %1777 = vmatpush2.msra.mxu0 %v1776
  %1778 = vmatprep.subr.mxu0 0.0
  %v1779 = vand.u32 %v74, 4294901760
  %1780 = vmatpush2.msra.mxu0 %v1779
  %1781 = vmatprep.subr.mxu0 0.0
  %v1782 = vand.u32 %v73, 4294901760
  %1783 = vmatpush2.msra.mxu0 %v1782
  %1784 = vmatprep.subr.mxu0 0.0
  %v1785 = vand.u32 %v72, 4294901760
  %1786 = vmatpush2.msra.mxu0 %v1785
  %1787 = vmatprep.subr.mxu0 0.0
  %v1788 = vand.u32 %v71, 4294901760
  %1789 = vmatpush2.msra.mxu0 %v1788
  %1790 = vmatprep.subr.mxu0 0.0
  %v1791 = vand.u32 %v70, 4294901760
  %1792 = vmatpush2.msra.mxu0 %v1791
  %1793 = vmatprep.subr.mxu0 0.0
  %v1794 = vand.u32 %v69, 4294901760
  %1795 = vmatpush2.msra.mxu0 %v1794
  %1796 = vmatprep.subr.mxu0 0.0
  %v1797 = vand.u32 %v68, 4294901760
  %1798 = vmatpush2.msra.mxu0 %v1797
  %1799 = vmatprep.subr.mxu0 0.0
  %v1800 = vand.u32 %v67, 4294901760
  %1801 = vmatpush2.msra.mxu0 %v1800
  %1802 = vmatprep.subr.mxu0 0.0
  %v1803 = vand.u32 %v66, 4294901760
  %1804 = vmatpush2.msra.mxu0 %v1803
  %v1805 = vand.u32 %v17, 4294901760
  %1806 = vmatprep.mubr.f32.mxu0 %v1805
  %v1807 = vand.u32 %v16, 4294901760
  %1808 = vmatmul.mubr.f32.gmra.mxu0 %v1807
  %v1809 = vpop.f32.mrf.mxu0
  %v1810 = vadd.f32 %v1706, %v1809
  %v1811 = vpop.f32.mrf.mxu0
  %1812 = vdwg.mxu0
  %vm1813 = vcmask 15360
  %1814 = vst.msk [vmem:[%s3] sm:$0xff] %vm1813, %v1810
  // Predicated region
  $region14: #{classifier_forward.1} parent=0 // pred_check
    _
  $region15: #{classifier_forward.1} parent=0 // pred_check_branch
    %1816 = sbr.rel (0) target = $region17
  $region16: #{classifier_forward.1} parent=0 // pred_region
    _
  $region17: #{classifier_forward.1} parent=0 // pred_fallthru
    _
  // Predicated region
  $region18: #{classifier_forward.1} parent=0 // pred_check
    _
  $region19: #{classifier_forward.1} parent=0 // pred_check_branch
    %1818 = sbr.rel (0) target = $region21
  $region20: #{classifier_forward.1} parent=0 // pred_region
    _
  $region21: #{classifier_forward.1} parent=0 // pred_fallthru
    _

</llo_original>
